<compile_context>
chip_gen: v5e
topology: v5e:2x2
jax: 0.10.0
libtpu: 0.0.40
codegen_flags: <defaults>
</compile_context>

<pallas_src>
import functools

import numpy as np
import jax
import jax.numpy as jnp
from jax import lax
from jax.experimental import pallas as pl
from jax.experimental.pallas import tpu as pltpu

C = 32                       # channels_num (adjacency in the reference is hard-coded 32x32)
K = 5                        # graph_convolution_kernel
BN_EPS = 1e-5
BN_SCALE = float(1.0 / np.sqrt(1.0 + BN_EPS))   # eval-mode BatchNorm2d(1), default stats/affine


# ----------------------------------------------------------------------------- kernel

def _fused_model_kernel(x_ref, pool_ref, gk_ref, aw1_ref, ab1_ref, aw2_ref, ab2_ref,
                        fw1_ref, fb1_ref, fw2_ref, fb2_ref, out_ref,
                        x_scr, att_scr, *, num_layers, num_heads, channels):
    """Whole forward pass in one kernel invocation.

    x_ref    : (C, B*L)          shared input block (head broadcast stays on-chip)
    pool_ref : (B*L, B)          constant per-sample time-averaging matrix (1/L blocks)
    gk_ref   : (NL, K*C, K*C)    block-diagonal graph kernels (all heads stacked)
    aw1..ab2 : per-layer channel-attention params, channel-major, BN-scale folded
    fw1..fb2 : classifier params, channel-major, BN-scale folded
    out_ref  : (num_classes, B)  softmax probabilities (transposed; wrapper flips)
    x_scr    : VMEM (K*C, B*L)   resident stacked activation
    att_scr  : VMEM (K*C, 1)     per-head channel-attention column
    """
    kc = num_heads * channels

    # Head broadcast: every head starts from the same (C, B*L) input block; the 5x
    # broadcast never touches HBM. batch_norm1 (eval mode) is folded into aw1/fw1.
    xin = x_ref[...]
    for k in range(num_heads):
        x_scr[k * channels:(k + 1) * channels, :] = xin

    pool = pool_ref[...]                                   # (B*L, B), resident

    def layer_body(l, carry):
        xv = x_scr[...]                                    # (K*C, B*L)

        # Per-sample time average on the MXU: (K*C, B*L) @ (B*L, B) -> (K*C, B).
        # TODO(synk): reference applies AdaptiveAvgPool2d(1) (pools time AND channel)
        # before Linear(C, 4), which shape-mismatches; the intended per-channel time
        # average is used.
        pooled = jnp.dot(xv, pool, preferred_element_type=jnp.float32)

        aw1 = aw1_ref[l]                                   # (4, C)  (BN-scale folded)
        ab1 = ab1_ref[l]                                   # (4, 1)
        aw2 = aw2_ref[l]                                   # (C, 4)
        ab2 = ab2_ref[l]                                   # (C, 1)

        # --- MyChannelAttention per head, channel-major (no transposes) -----------
        for k in range(num_heads):                         # static, 5 heads
            pk = pooled[k * channels:(k + 1) * channels, :]                     # (C, B)
            h = jnp.tanh(jnp.dot(aw1, pk, preferred_element_type=jnp.float32) + ab1)   # (4, B)
            z = jnp.dot(aw2, h, preferred_element_type=jnp.float32) + ab2              # (C, B)
            # torch.mean(..., dim=0) over the batch -> (C, 1) attention column.
            att_scr[k * channels:(k + 1) * channels, :] = jnp.mean(z, axis=1, keepdims=True)

        # --- MyGraphConvolution, all heads in one MXU matmul -----------------------
        # y = (att * gk) @ x  ==  gk @ (att_col * x)  (column-scale of gk == row-scale of x)
        y = jnp.dot(gk_ref[l], att_scr[...] * xv, preferred_element_type=jnp.float32)
        # ReLU; eval-mode BatchNorm2d(1) scale is folded into the parameters at init.
        # TODO(synk): reference BatchNorm2d(1) would shape-mismatch the 5-head tensor
        # in train mode; broadcast scale over heads is used (eval-mode semantics).
        x_scr[...] = jnp.maximum(y, 0.0)
        return carry

    lax.fori_loop(0, num_layers, layer_body, 0)

    # --- classifier head (fused) ---------------------------------------------------
    # Per-head per-sample time average, then mean over heads -> (C, B) features.
    # TODO(synk): reference AdaptiveAvgPool2d((1, sample_len)) + Flatten feeds
    # Linear(32, 8) with the wrong width; the intended global average over heads and
    # time is used. Dropout = identity (inference).
    pooled = jnp.dot(x_scr[...], pool, preferred_element_type=jnp.float32)   # (K*C, B)
    feats = pooled[0:channels, :]
    for k in range(1, num_heads):
        feats = feats + pooled[k * channels:(k + 1) * channels, :]
    feats = feats * (1.0 / num_heads)                                        # (C, B)

    h = jnp.tanh(jnp.dot(fw1_ref[...], feats, preferred_element_type=jnp.float32)
                 + fb1_ref[...])                                             # (8, B)
    logits = jnp.dot(fw2_ref[...], h, preferred_element_type=jnp.float32) + fb2_ref[...]  # (nc, B)

    # F.softmax(dim=1) over classes; exact divide (tiny tensor, rows sum to 1 tightly).
    m = jnp.max(logits, axis=0, keepdims=True)
    e = jnp.exp(logits - m)
    out_ref[...] = e / jnp.sum(e, axis=0, keepdims=True)


# ----------------------------------------------------------------------------- wrapper

def fused_model(x2d, pool, params, *, batch, num_classes):
    """x2d: (C, B*L).  Returns class probabilities transposed: (num_classes, B)."""
    Cc, BL = x2d.shape
    gk = params["gk_block"]                                # (NL, K*C, K*C)
    num_layers, KC, _ = gk.shape
    num_heads = KC // Cc

    kernel = functools.partial(_fused_model_kernel, num_layers=num_layers,
                               num_heads=num_heads, channels=Cc)

    # VMEM footprint: x_scr (K*C, B*L) + gk stack (~1 MB) + params -- a couple of MB
    # even at sample_len=1280, far below the scoped limit on v5e/v6e/v7x.
    return pl.pallas_call(
        kernel,
        out_shape=jax.ShapeDtypeStruct((num_classes, batch), jnp.float32),
        grid=(1,),
        in_specs=[
            pl.BlockSpec((Cc, BL), lambda i: (0, 0)),                  # shared input
            pl.BlockSpec((BL, batch), lambda i: (0, 0)),               # pooling matrix
            pl.BlockSpec((num_layers, KC, KC), lambda i: (0, 0, 0)),   # block-diag gk
            pl.BlockSpec((num_layers, 4, Cc), lambda i: (0, 0, 0)),    # aw1 (transposed)
            pl.BlockSpec((num_layers, 4, 1), lambda i: (0, 0, 0)),     # ab1
            pl.BlockSpec((num_layers, Cc, 4), lambda i: (0, 0, 0)),    # aw2 (transposed)
            pl.BlockSpec((num_layers, Cc, 1), lambda i: (0, 0, 0)),    # ab2
            pl.BlockSpec((8, Cc), lambda i: (0, 0)),                   # fc1 weight (transposed)
            pl.BlockSpec((8, 1), lambda i: (0, 0)),                    # fc1 bias
            pl.BlockSpec((num_classes, 8), lambda i: (0, 0)),          # fc2 weight (transposed)
            pl.BlockSpec((num_classes, 1), lambda i: (0, 0)),          # fc2 bias
        ],
        out_specs=pl.BlockSpec((num_classes, batch), lambda i: (0, 0)),
        scratch_shapes=[pltpu.VMEM((KC, BL), jnp.float32),
                        pltpu.VMEM((KC, 1), jnp.float32)],
        compiler_params=pltpu.CompilerParams(dimension_semantics=("arbitrary",)),
    )(x2d, pool, gk, params["aw1_t"], params["ab1"], params["aw2_t"], params["ab2"],
      params["fw1_t"], params["fb1"], params["fw2_t"], params["fb2"])


# ----------------------------------------------------------------------------- params

def build_graph_kernels(key, num_layers):
    # TODO(synk): edges.npy is not readable here — use a deterministic synthetic edge list.
    edges = [(i, (i + 1) % C) for i in range(C)] + [(i, (i + 4) % C) for i in range(C)]
    adjacency = np.zeros((C, C))
    for a, b in edges:
        adjacency[a][b] = 1
        adjacency[b][a] = 1
    adjacency = np.sign(adjacency + np.eye(C))
    # TODO(synk): reference uses np.eye(64) (shape mismatch for 32 channels); use eye(C).
    laplacian = np.sum(adjacency, axis=0) * np.eye(C) - adjacency
    # TODO(synk): reference uses np.linalg.eig; matrix is symmetric so eigh (real) is used.
    _, e_vets = np.linalg.eigh(laplacian)
    e_vets = jnp.asarray(e_vets, dtype=jnp.float32)

    eye = jnp.eye(C, dtype=jnp.float32)
    diag = jax.random.normal(key, (num_layers, K, 1, C), dtype=jnp.float32)
    gk = diag * eye                                        # (NL, K, C, C) diagonal per head
    gk = jnp.matmul(jnp.matmul(e_vets, gk), e_vets.T)      # spectral filter

    # Stack the K heads block-diagonally along the sublane axis: (NL, K*C, K*C) so
    # every layer is one MXU matmul on the (K*C, B*L) resident activation.
    gk_block = jnp.zeros((num_layers, K * C, K * C), dtype=jnp.float32)
    for k in range(K):
        gk_block = gk_block.at[:, k * C:(k + 1) * C, k * C:(k + 1) * C].set(gk[:, k])
    return gk_block


def init_params(key, num_layers, num_classes):
    gk_block = build_graph_kernels(jax.random.fold_in(key, 1000), num_layers)
    k1, k2, k3, k4 = jax.random.split(jax.random.fold_in(key, 0), 4)
    kf1, kf2, kf3, kf4 = jax.random.split(jax.random.fold_in(key, 2000), 4)

    # Eval-mode BatchNorm2d(1) (default running stats/affine) is a pure positive scale
    # s = 1/sqrt(1+eps).  relu(s*y) == s*relu(y), so the scale commutes through the whole
    # linear/ReLU stack; fold the cumulative factor into the only nonlinear consumers:
    #   activation entering graph layer l carries s^(l+1)  ->  pre-scale aw1[l] by s^(l+1)
    #   pooled features entering fc1 carry        s^(NL+1) ->  pre-scale fw1  by s^(NL+1)
    # This keeps tanh inputs bit-identical while removing all in-kernel BN multiplies.
    bn_pow = (BN_SCALE ** np.arange(1, num_layers + 1)).astype(np.float32)[:, None, None]
    bn_final = float(BN_SCALE ** (num_layers + 1))

    # All weights stored channel-major (pre-transposed) so the kernel never transposes.
    return dict(
        gk_block=gk_block,                                                         # (NL, K*C, K*C)
        aw1_t=0.3 * jax.random.normal(k1, (num_layers, 4, C), jnp.float32) * bn_pow,
        ab1=0.1 * jax.random.normal(k2, (num_layers, 4, 1), jnp.float32),
        aw2_t=0.3 * jax.random.normal(k3, (num_layers, C, 4), jnp.float32),
        ab2=0.1 * jax.random.normal(k4, (num_layers, C, 1), jnp.float32),
        fw1_t=0.3 * jax.random.normal(kf1, (8, C), jnp.float32) * bn_final,
        fb1=0.1 * jax.random.normal(kf2, (8, 1), jnp.float32),
        fw2_t=0.3 * jax.random.normal(kf3, (num_classes, 8), jnp.float32),
        fb2=0.1 * jax.random.normal(kf4, (num_classes, 1), jnp.float32),
    )


# ----------------------------------------------------------------------------- forward

def model_forward(x, params):
    """x: (B, sample_len, channels_num) float32, matching the PyTorch input convention."""
    B, L, Cc = x.shape
    num_classes = params["fw2_t"].shape[0]
    # permute(0,2,1) of the reference + pack batch into the lane axis: (C, B*L)   (glue)
    x2d = jnp.transpose(x, (2, 0, 1)).reshape(Cc, B * L)
    # Constant block-diagonal per-sample time-averaging matrix (1/L), trace-time constant.
    pool = jnp.asarray(np.kron(np.eye(B), np.ones((L, 1)) / L), dtype=jnp.float32)  # (B*L, B)
    # Everything else (BN, 10 graph layers + attention, pooling, fc1/tanh/fc2/softmax)
    # is fused into a single pallas_call.
    probs_t = fused_model(x2d, pool, params, batch=B, num_classes=num_classes)  # (nc, B)
    return probs_t.T                                                             # (B, nc)


# ----------------------------------------------------------------------------- main

if __name__ == "__main__":
    B = 2
    L = 128          # small sample_len (module default is 1280), multiple of 128 for lane alignment
    NUM_CLASSES = 4
    NUM_LAYERS = 10  # graph_layer_num

    key = jax.random.PRNGKey(0)
    kx, kp = jax.random.split(key)
    x = jax.random.normal(kx, (B, L, C), dtype=jnp.float32)
    params = init_params(kp, NUM_LAYERS, NUM_CLASSES)

    forward = jax.jit(model_forward)
    out = jax.block_until_ready(forward(x, params))

    assert out.shape == (B, NUM_CLASSES), out.shape
    assert bool(jnp.all(jnp.isfinite(out)))
    # exact softmax divide -> rows sum to 1 tightly
    assert bool(jnp.allclose(jnp.sum(out, axis=1), 1.0, atol=1e-4))
    print("KERNEL_OK")
</pallas_src>

<mosaic_0001>
module attributes {stable_mosaic.version = 11 : i64} {
  func.func @_fused_model_kernel(%arg0: i32, %arg1: memref<32x256xf32, #tpu.memory_space<vmem>>, %arg2: memref<256x2xf32, #tpu.memory_space<vmem>>, %arg3: memref<10x160x160xf32, #tpu.memory_space<vmem>>, %arg4: memref<10x4x32xf32, #tpu.memory_space<vmem>>, %arg5: memref<10x4x1xf32, #tpu.memory_space<vmem>>, %arg6: memref<10x32x4xf32, #tpu.memory_space<vmem>>, %arg7: memref<10x32x1xf32, #tpu.memory_space<vmem>>, %arg8: memref<8x32xf32, #tpu.memory_space<vmem>>, %arg9: memref<8x1xf32, #tpu.memory_space<vmem>>, %arg10: memref<4x8xf32, #tpu.memory_space<vmem>>, %arg11: memref<4x1xf32, #tpu.memory_space<vmem>>, %arg12: memref<4x2xf32, #tpu.memory_space<vmem>>, %arg13: memref<160x256xf32, #tpu.memory_space<vmem>>, %arg14: memref<160x1xf32, #tpu.memory_space<vmem>>) attributes {dimension_semantics = [#tpu.dimension_semantics<arbitrary>], iteration_bounds = array<i64: 1>, scalar_prefetch = 0 : i64, scratch_operands = 2 : i64, tpu.core_type = #tpu.core_type<tc>, window_params = [{pipeline_mode = #tpu.pipeline_mode<synchronous>, transform_indices = @transform_0, window_bounds = array<i64: 32, 256>}, {pipeline_mode = #tpu.pipeline_mode<synchronous>, transform_indices = @transform_1, window_bounds = array<i64: 256, 2>}, {pipeline_mode = #tpu.pipeline_mode<synchronous>, transform_indices = @transform_2, window_bounds = array<i64: 10, 160, 160>}, {pipeline_mode = #tpu.pipeline_mode<synchronous>, transform_indices = @transform_3, window_bounds = array<i64: 10, 4, 32>}, {pipeline_mode = #tpu.pipeline_mode<synchronous>, transform_indices = @transform_4, window_bounds = array<i64: 10, 4, 1>}, {pipeline_mode = #tpu.pipeline_mode<synchronous>, transform_indices = @transform_5, window_bounds = array<i64: 10, 32, 4>}, {pipeline_mode = #tpu.pipeline_mode<synchronous>, transform_indices = @transform_6, window_bounds = array<i64: 10, 32, 1>}, {pipeline_mode = #tpu.pipeline_mode<synchronous>, transform_indices = @transform_7, window_bounds = array<i64: 8, 32>}, {pipeline_mode = #tpu.pipeline_mode<synchronous>, transform_indices = @transform_8, window_bounds = array<i64: 8, 1>}, {pipeline_mode = #tpu.pipeline_mode<synchronous>, transform_indices = @transform_9, window_bounds = array<i64: 4, 8>}, {pipeline_mode = #tpu.pipeline_mode<synchronous>, transform_indices = @transform_10, window_bounds = array<i64: 4, 1>}, {pipeline_mode = #tpu.pipeline_mode<synchronous>, transform_indices = @transform_11, window_bounds = array<i64: 4, 2>}]} {
    %c0 = arith.constant 0 : index
    %c0_0 = arith.constant 0 : index
    %0 = vector.load %arg1[%c0, %c0_0] : memref<32x256xf32, #tpu.memory_space<vmem>>, vector<32x256xf32>
    %c0_1 = arith.constant 0 : index
    %c0_2 = arith.constant 0 : index
    %1 = vector.load %arg13[%c0_1, %c0_2] : memref<160x256xf32, #tpu.memory_space<vmem>>, vector<32x256xf32>
    tpu.vector_store %arg13[%c0_1, %c0_2], %0 {strides = array<i32>} : memref<160x256xf32, #tpu.memory_space<vmem>>, vector<32x256xf32>,
    %c32 = arith.constant 32 : index
    %c0_3 = arith.constant 0 : index
    %2 = vector.load %arg13[%c32, %c0_3] : memref<160x256xf32, #tpu.memory_space<vmem>>, vector<32x256xf32>
    tpu.vector_store %arg13[%c32, %c0_3], %0 {strides = array<i32>} : memref<160x256xf32, #tpu.memory_space<vmem>>, vector<32x256xf32>,
    %c64 = arith.constant 64 : index
    %c0_4 = arith.constant 0 : index
    %3 = vector.load %arg13[%c64, %c0_4] : memref<160x256xf32, #tpu.memory_space<vmem>>, vector<32x256xf32>
    tpu.vector_store %arg13[%c64, %c0_4], %0 {strides = array<i32>} : memref<160x256xf32, #tpu.memory_space<vmem>>, vector<32x256xf32>,
    %c96 = arith.constant 96 : index
    %c0_5 = arith.constant 0 : index
    %4 = vector.load %arg13[%c96, %c0_5] : memref<160x256xf32, #tpu.memory_space<vmem>>, vector<32x256xf32>
    tpu.vector_store %arg13[%c96, %c0_5], %0 {strides = array<i32>} : memref<160x256xf32, #tpu.memory_space<vmem>>, vector<32x256xf32>,
    %c128 = arith.constant 128 : index
    %c0_6 = arith.constant 0 : index
    %5 = vector.load %arg13[%c128, %c0_6] : memref<160x256xf32, #tpu.memory_space<vmem>>, vector<32x256xf32>
    tpu.vector_store %arg13[%c128, %c0_6], %0 {strides = array<i32>} : memref<160x256xf32, #tpu.memory_space<vmem>>, vector<32x256xf32>,
    %c0_7 = arith.constant 0 : index
    %c0_8 = arith.constant 0 : index
    %6 = vector.load %arg2[%c0_7, %c0_8] : memref<256x2xf32, #tpu.memory_space<vmem>>, vector<256x2xf32>
    %c0_i32 = arith.constant 0 : i32
    %c10_i32 = arith.constant 10 : i32
    %7 = arith.addi %c0_i32, %c10_i32 : i32
    %c1_i32 = arith.constant 1 : i32
    scf.for %arg15 = %c0_i32 to %7 step %c1_i32  : i32 {
      %c0_27 = arith.constant 0 : index
      %c0_28 = arith.constant 0 : index
      %42 = vector.load %arg13[%c0_27, %c0_28] : memref<160x256xf32, #tpu.memory_space<vmem>>, vector<160x256xf32>
      %cst_29 = arith.constant dense<0.000000e+00> : vector<160x2xf32>
      %43 = tpu.matmul %42, %6, %cst_29 {dimension_numbers = #tpu.dot_dimension_numbers<[1], [0], [0], [1], [0, 0, 1, 1], [], []>} : vector<160x256xf32>, vector<256x2xf32>, vector<160x2xf32> -> vector<160x2xf32>
      %44 = arith.index_cast %arg15 : i32 to index
      %c0_30 = arith.constant 0 : index
      %c0_31 = arith.constant 0 : index
      %45 = vector.load %arg4[%44, %c0_30, %c0_31] : memref<10x4x32xf32, #tpu.memory_space<vmem>>, vector<1x4x32xf32>
      %46 = vector.shape_cast %45 : vector<1x4x32xf32> to vector<4x32xf32>
      %47 = arith.index_cast %arg15 : i32 to index
      %c0_32 = arith.constant 0 : index
      %c0_33 = arith.constant 0 : index
      %48 = vector.load %arg5[%47, %c0_32, %c0_33] : memref<10x4x1xf32, #tpu.memory_space<vmem>>, vector<1x4x1xf32>
      %49 = vector.shape_cast %48 : vector<1x4x1xf32> to vector<4x1xf32>
      %50 = arith.index_cast %arg15 : i32 to index
      %c0_34 = arith.constant 0 : index
      %c0_35 = arith.constant 0 : index
      %51 = vector.load %arg6[%50, %c0_34, %c0_35] : memref<10x32x4xf32, #tpu.memory_space<vmem>>, vector<1x32x4xf32>
      %52 = vector.shape_cast %51 : vector<1x32x4xf32> to vector<32x4xf32>
      %53 = arith.index_cast %arg15 : i32 to index
      %c0_36 = arith.constant 0 : index
      %c0_37 = arith.constant 0 : index
      %54 = vector.load %arg7[%53, %c0_36, %c0_37] : memref<10x32x1xf32, #tpu.memory_space<vmem>>, vector<1x32x1xf32>
      %55 = vector.shape_cast %54 : vector<1x32x1xf32> to vector<32x1xf32>
      %56 = vector.extract_strided_slice %43 {offsets = [0, 0], sizes = [32, 2], strides = [1, 1]} : vector<160x2xf32> to vector<32x2xf32>
      %cst_38 = arith.constant dense<0.000000e+00> : vector<4x2xf32>
      %57 = tpu.matmul %46, %56, %cst_38 {dimension_numbers = #tpu.dot_dimension_numbers<[1], [0], [0], [1], [0, 0, 1, 1], [], []>} : vector<4x32xf32>, vector<32x2xf32>, vector<4x2xf32> -> vector<4x2xf32>
      %58 = vector.broadcast %49 : vector<4x1xf32> to vector<4x2xf32>
      %59 = arith.addf %57, %58 : vector<4x2xf32>
      %60 = math.tanh %59 : vector<4x2xf32>
      %cst_39 = arith.constant dense<0.000000e+00> : vector<32x2xf32>
      %61 = tpu.matmul %52, %60, %cst_39 {dimension_numbers = #tpu.dot_dimension_numbers<[1], [0], [0], [1], [0, 0, 1, 1], [], []>} : vector<32x4xf32>, vector<4x2xf32>, vector<32x2xf32> -> vector<32x2xf32>
      %62 = vector.broadcast %55 : vector<32x1xf32> to vector<32x2xf32>
      %63 = arith.addf %61, %62 : vector<32x2xf32>
      %cst_40 = arith.constant dense<0.000000e+00> : vector<32xf32>
      %64 = vector.multi_reduction <add>, %63, %cst_40 [1] : vector<32x2xf32> to vector<32xf32>
      %65 = vector.shape_cast %64 : vector<32xf32> to vector<32x1xf32>
      %cst_41 = arith.constant 2.000000e+00 : f32
      %66 = vector.broadcast %cst_41 : f32 to vector<32x1xf32>
      %67 = arith.divf %65, %66 : vector<32x1xf32>
      %c0_42 = arith.constant 0 : index
      %c0_43 = arith.constant 0 : index
      %68 = vector.load %arg14[%c0_42, %c0_43] : memref<160x1xf32, #tpu.memory_space<vmem>>, vector<32x1xf32>
      tpu.vector_store %arg14[%c0_42, %c0_43], %67 {strides = array<i32>} : memref<160x1xf32, #tpu.memory_space<vmem>>, vector<32x1xf32>,
      %69 = vector.extract_strided_slice %43 {offsets = [32, 0], sizes = [32, 2], strides = [1, 1]} : vector<160x2xf32> to vector<32x2xf32>
      %cst_44 = arith.constant dense<0.000000e+00> : vector<4x2xf32>
      %70 = tpu.matmul %46, %69, %cst_44 {dimension_numbers = #tpu.dot_dimension_numbers<[1], [0], [0], [1], [0, 0, 1, 1], [], []>} : vector<4x32xf32>, vector<32x2xf32>, vector<4x2xf32> -> vector<4x2xf32>
      %71 = vector.broadcast %49 : vector<4x1xf32> to vector<4x2xf32>
      %72 = arith.addf %70, %71 : vector<4x2xf32>
      %73 = math.tanh %72 : vector<4x2xf32>
      %cst_45 = arith.constant dense<0.000000e+00> : vector<32x2xf32>
      %74 = tpu.matmul %52, %73, %cst_45 {dimension_numbers = #tpu.dot_dimension_numbers<[1], [0], [0], [1], [0, 0, 1, 1], [], []>} : vector<32x4xf32>, vector<4x2xf32>, vector<32x2xf32> -> vector<32x2xf32>
      %75 = vector.broadcast %55 : vector<32x1xf32> to vector<32x2xf32>
      %76 = arith.addf %74, %75 : vector<32x2xf32>
      %cst_46 = arith.constant dense<0.000000e+00> : vector<32xf32>
      %77 = vector.multi_reduction <add>, %76, %cst_46 [1] : vector<32x2xf32> to vector<32xf32>
      %78 = vector.shape_cast %77 : vector<32xf32> to vector<32x1xf32>
      %cst_47 = arith.constant 2.000000e+00 : f32
      %79 = vector.broadcast %cst_47 : f32 to vector<32x1xf32>
      %80 = arith.divf %78, %79 : vector<32x1xf32>
      %c32_48 = arith.constant 32 : index
      %c0_49 = arith.constant 0 : index
      %81 = vector.load %arg14[%c32_48, %c0_49] : memref<160x1xf32, #tpu.memory_space<vmem>>, vector<32x1xf32>
      tpu.vector_store %arg14[%c32_48, %c0_49], %80 {strides = array<i32>} : memref<160x1xf32, #tpu.memory_space<vmem>>, vector<32x1xf32>,
      %82 = vector.extract_strided_slice %43 {offsets = [64, 0], sizes = [32, 2], strides = [1, 1]} : vector<160x2xf32> to vector<32x2xf32>
      %cst_50 = arith.constant dense<0.000000e+00> : vector<4x2xf32>
      %83 = tpu.matmul %46, %82, %cst_50 {dimension_numbers = #tpu.dot_dimension_numbers<[1], [0], [0], [1], [0, 0, 1, 1], [], []>} : vector<4x32xf32>, vector<32x2xf32>, vector<4x2xf32> -> vector<4x2xf32>
      %84 = vector.broadcast %49 : vector<4x1xf32> to vector<4x2xf32>
      %85 = arith.addf %83, %84 : vector<4x2xf32>
      %86 = math.tanh %85 : vector<4x2xf32>
      %cst_51 = arith.constant dense<0.000000e+00> : vector<32x2xf32>
      %87 = tpu.matmul %52, %86, %cst_51 {dimension_numbers = #tpu.dot_dimension_numbers<[1], [0], [0], [1], [0, 0, 1, 1], [], []>} : vector<32x4xf32>, vector<4x2xf32>, vector<32x2xf32> -> vector<32x2xf32>
      %88 = vector.broadcast %55 : vector<32x1xf32> to vector<32x2xf32>
      %89 = arith.addf %87, %88 : vector<32x2xf32>
      %cst_52 = arith.constant dense<0.000000e+00> : vector<32xf32>
      %90 = vector.multi_reduction <add>, %89, %cst_52 [1] : vector<32x2xf32> to vector<32xf32>
      %91 = vector.shape_cast %90 : vector<32xf32> to vector<32x1xf32>
      %cst_53 = arith.constant 2.000000e+00 : f32
      %92 = vector.broadcast %cst_53 : f32 to vector<32x1xf32>
      %93 = arith.divf %91, %92 : vector<32x1xf32>
      %c64_54 = arith.constant 64 : index
      %c0_55 = arith.constant 0 : index
      %94 = vector.load %arg14[%c64_54, %c0_55] : memref<160x1xf32, #tpu.memory_space<vmem>>, vector<32x1xf32>
      tpu.vector_store %arg14[%c64_54, %c0_55], %93 {strides = array<i32>} : memref<160x1xf32, #tpu.memory_space<vmem>>, vector<32x1xf32>,
      %95 = vector.extract_strided_slice %43 {offsets = [96, 0], sizes = [32, 2], strides = [1, 1]} : vector<160x2xf32> to vector<32x2xf32>
      %cst_56 = arith.constant dense<0.000000e+00> : vector<4x2xf32>
      %96 = tpu.matmul %46, %95, %cst_56 {dimension_numbers = #tpu.dot_dimension_numbers<[1], [0], [0], [1], [0, 0, 1, 1], [], []>} : vector<4x32xf32>, vector<32x2xf32>, vector<4x2xf32> -> vector<4x2xf32>
      %97 = vector.broadcast %49 : vector<4x1xf32> to vector<4x2xf32>
      %98 = arith.addf %96, %97 : vector<4x2xf32>
      %99 = math.tanh %98 : vector<4x2xf32>
      %cst_57 = arith.constant dense<0.000000e+00> : vector<32x2xf32>
      %100 = tpu.matmul %52, %99, %cst_57 {dimension_numbers = #tpu.dot_dimension_numbers<[1], [0], [0], [1], [0, 0, 1, 1], [], []>} : vector<32x4xf32>, vector<4x2xf32>, vector<32x2xf32> -> vector<32x2xf32>
      %101 = vector.broadcast %55 : vector<32x1xf32> to vector<32x2xf32>
      %102 = arith.addf %100, %101 : vector<32x2xf32>
      %cst_58 = arith.constant dense<0.000000e+00> : vector<32xf32>
      %103 = vector.multi_reduction <add>, %102, %cst_58 [1] : vector<32x2xf32> to vector<32xf32>
      %104 = vector.shape_cast %103 : vector<32xf32> to vector<32x1xf32>
      %cst_59 = arith.constant 2.000000e+00 : f32
      %105 = vector.broadcast %cst_59 : f32 to vector<32x1xf32>
      %106 = arith.divf %104, %105 : vector<32x1xf32>
      %c96_60 = arith.constant 96 : index
      %c0_61 = arith.constant 0 : index
      %107 = vector.load %arg14[%c96_60, %c0_61] : memref<160x1xf32, #tpu.memory_space<vmem>>, vector<32x1xf32>
      tpu.vector_store %arg14[%c96_60, %c0_61], %106 {strides = array<i32>} : memref<160x1xf32, #tpu.memory_space<vmem>>, vector<32x1xf32>,
      %108 = vector.extract_strided_slice %43 {offsets = [128, 0], sizes = [32, 2], strides = [1, 1]} : vector<160x2xf32> to vector<32x2xf32>
      %cst_62 = arith.constant dense<0.000000e+00> : vector<4x2xf32>
      %109 = tpu.matmul %46, %108, %cst_62 {dimension_numbers = #tpu.dot_dimension_numbers<[1], [0], [0], [1], [0, 0, 1, 1], [], []>} : vector<4x32xf32>, vector<32x2xf32>, vector<4x2xf32> -> vector<4x2xf32>
      %110 = vector.broadcast %49 : vector<4x1xf32> to vector<4x2xf32>
      %111 = arith.addf %109, %110 : vector<4x2xf32>
      %112 = math.tanh %111 : vector<4x2xf32>
      %cst_63 = arith.constant dense<0.000000e+00> : vector<32x2xf32>
      %113 = tpu.matmul %52, %112, %cst_63 {dimension_numbers = #tpu.dot_dimension_numbers<[1], [0], [0], [1], [0, 0, 1, 1], [], []>} : vector<32x4xf32>, vector<4x2xf32>, vector<32x2xf32> -> vector<32x2xf32>
      %114 = vector.broadcast %55 : vector<32x1xf32> to vector<32x2xf32>
      %115 = arith.addf %113, %114 : vector<32x2xf32>
      %cst_64 = arith.constant dense<0.000000e+00> : vector<32xf32>
      %116 = vector.multi_reduction <add>, %115, %cst_64 [1] : vector<32x2xf32> to vector<32xf32>
      %117 = vector.shape_cast %116 : vector<32xf32> to vector<32x1xf32>
      %cst_65 = arith.constant 2.000000e+00 : f32
      %118 = vector.broadcast %cst_65 : f32 to vector<32x1xf32>
      %119 = arith.divf %117, %118 : vector<32x1xf32>
      %c128_66 = arith.constant 128 : index
      %c0_67 = arith.constant 0 : index
      %120 = vector.load %arg14[%c128_66, %c0_67] : memref<160x1xf32, #tpu.memory_space<vmem>>, vector<32x1xf32>
      tpu.vector_store %arg14[%c128_66, %c0_67], %119 {strides = array<i32>} : memref<160x1xf32, #tpu.memory_space<vmem>>, vector<32x1xf32>,
      %121 = arith.index_cast %arg15 : i32 to index
      %c0_68 = arith.constant 0 : index
      %c0_69 = arith.constant 0 : index
      %122 = vector.load %arg3[%121, %c0_68, %c0_69] : memref<10x160x160xf32, #tpu.memory_space<vmem>>, vector<1x160x160xf32>
      %123 = vector.shape_cast %122 : vector<1x160x160xf32> to vector<160x160xf32>
      %c0_70 = arith.constant 0 : index
      %c0_71 = arith.constant 0 : index
      %124 = vector.load %arg14[%c0_70, %c0_71] : memref<160x1xf32, #tpu.memory_space<vmem>>, vector<160x1xf32>
      %125 = vector.broadcast %124 : vector<160x1xf32> to vector<160x256xf32>
      %126 = arith.mulf %125, %42 : vector<160x256xf32>
      %cst_72 = arith.constant dense<0.000000e+00> : vector<160x256xf32>
      %127 = tpu.matmul %123, %126, %cst_72 {dimension_numbers = #tpu.dot_dimension_numbers<[1], [0], [0], [1], [0, 0, 1, 1], [], []>} : vector<160x160xf32>, vector<160x256xf32>, vector<160x256xf32> -> vector<160x256xf32>
      %cst_73 = arith.constant 0.000000e+00 : f32
      %128 = vector.broadcast %cst_73 : f32 to vector<160x256xf32>
      %129 = arith.maximumf %127, %128 : vector<160x256xf32>
      %c0_74 = arith.constant 0 : index
      %c0_75 = arith.constant 0 : index
      %130 = vector.load %arg13[%c0_74, %c0_75] : memref<160x256xf32, #tpu.memory_space<vmem>>, vector<160x256xf32>
      tpu.vector_store %arg13[%c0_74, %c0_75], %129 {strides = array<i32>} : memref<160x256xf32, #tpu.memory_space<vmem>>, vector<160x256xf32>,
    }
    %c10_i32_9 = arith.constant 10 : i32
    %c0_10 = arith.constant 0 : index
    %c0_11 = arith.constant 0 : index
    %8 = vector.load %arg13[%c0_10, %c0_11] : memref<160x256xf32, #tpu.memory_space<vmem>>, vector<160x256xf32>
    %cst = arith.constant dense<0.000000e+00> : vector<160x2xf32>
    %9 = tpu.matmul %8, %6, %cst {dimension_numbers = #tpu.dot_dimension_numbers<[1], [0], [0], [1], [0, 0, 1, 1], [], []>} : vector<160x256xf32>, vector<256x2xf32>, vector<160x2xf32> -> vector<160x2xf32>
    %10 = vector.extract_strided_slice %9 {offsets = [0, 0], sizes = [32, 2], strides = [1, 1]} : vector<160x2xf32> to vector<32x2xf32>
    %11 = vector.extract_strided_slice %9 {offsets = [32, 0], sizes = [32, 2], strides = [1, 1]} : vector<160x2xf32> to vector<32x2xf32>
    %12 = arith.addf %10, %11 : vector<32x2xf32>
    %13 = vector.extract_strided_slice %9 {offsets = [64, 0], sizes = [32, 2], strides = [1, 1]} : vector<160x2xf32> to vector<32x2xf32>
    %14 = arith.addf %12, %13 : vector<32x2xf32>
    %15 = vector.extract_strided_slice %9 {offsets = [96, 0], sizes = [32, 2], strides = [1, 1]} : vector<160x2xf32> to vector<32x2xf32>
    %16 = arith.addf %14, %15 : vector<32x2xf32>
    %17 = vector.extract_strided_slice %9 {offsets = [128, 0], sizes = [32, 2], strides = [1, 1]} : vector<160x2xf32> to vector<32x2xf32>
    %18 = arith.addf %16, %17 : vector<32x2xf32>
    %cst_12 = arith.constant 2.000000e-01 : f32
    %19 = vector.broadcast %cst_12 : f32 to vector<32x2xf32>
    %20 = arith.mulf %18, %19 : vector<32x2xf32>
    %c0_13 = arith.constant 0 : index
    %c0_14 = arith.constant 0 : index
    %21 = vector.load %arg8[%c0_13, %c0_14] : memref<8x32xf32, #tpu.memory_space<vmem>>, vector<8x32xf32>
    %cst_15 = arith.constant dense<0.000000e+00> : vector<8x2xf32>
    %22 = tpu.matmul %21, %20, %cst_15 {dimension_numbers = #tpu.dot_dimension_numbers<[1], [0], [0], [1], [0, 0, 1, 1], [], []>} : vector<8x32xf32>, vector<32x2xf32>, vector<8x2xf32> -> vector<8x2xf32>
    %c0_16 = arith.constant 0 : index
    %c0_17 = arith.constant 0 : index
    %23 = vector.load %arg9[%c0_16, %c0_17] : memref<8x1xf32, #tpu.memory_space<vmem>>, vector<8x1xf32>
    %24 = vector.broadcast %23 : vector<8x1xf32> to vector<8x2xf32>
    %25 = arith.addf %22, %24 : vector<8x2xf32>
    %26 = math.tanh %25 : vector<8x2xf32>
    %c0_18 = arith.constant 0 : index
    %c0_19 = arith.constant 0 : index
    %27 = vector.load %arg10[%c0_18, %c0_19] : memref<4x8xf32, #tpu.memory_space<vmem>>, vector<4x8xf32>
    %cst_20 = arith.constant dense<0.000000e+00> : vector<4x2xf32>
    %28 = tpu.matmul %27, %26, %cst_20 {dimension_numbers = #tpu.dot_dimension_numbers<[1], [0], [0], [1], [0, 0, 1, 1], [], []>} : vector<4x8xf32>, vector<8x2xf32>, vector<4x2xf32> -> vector<4x2xf32>
    %c0_21 = arith.constant 0 : index
    %c0_22 = arith.constant 0 : index
    %29 = vector.load %arg11[%c0_21, %c0_22] : memref<4x1xf32, #tpu.memory_space<vmem>>, vector<4x1xf32>
    %30 = vector.broadcast %29 : vector<4x1xf32> to vector<4x2xf32>
    %31 = arith.addf %28, %30 : vector<4x2xf32>
    %cst_23 = arith.constant dense<0xFF800000> : vector<2xf32>
    %32 = vector.multi_reduction <maximumf>, %31, %cst_23 [0] : vector<4x2xf32> to vector<2xf32>
    %33 = vector.shape_cast %32 : vector<2xf32> to vector<1x2xf32>
    %34 = vector.broadcast %33 : vector<1x2xf32> to vector<4x2xf32>
    %35 = arith.subf %31, %34 : vector<4x2xf32>
    %36 = math.exp %35 : vector<4x2xf32>
    %cst_24 = arith.constant dense<0.000000e+00> : vector<2xf32>
    %37 = vector.multi_reduction <add>, %36, %cst_24 [0] : vector<4x2xf32> to vector<2xf32>
    %38 = vector.shape_cast %37 : vector<2xf32> to vector<1x2xf32>
    %39 = vector.broadcast %38 : vector<1x2xf32> to vector<4x2xf32>
    %40 = arith.divf %36, %39 : vector<4x2xf32>
    %c0_25 = arith.constant 0 : index
    %c0_26 = arith.constant 0 : index
    %41 = vector.load %arg12[%c0_25, %c0_26] : memref<4x2xf32, #tpu.memory_space<vmem>>, vector<4x2xf32>
    tpu.vector_store %arg12[%c0_25, %c0_26], %40 {strides = array<i32>} : memref<4x2xf32, #tpu.memory_space<vmem>>, vector<4x2xf32>,
    return
  }
  func.func @transform_0(%arg0: i32) -> (i32, i32) {
    %c0_i32 = arith.constant 0 : i32
    %c0_i32_0 = arith.constant 0 : i32
    %c0_i32_1 = arith.constant 0 : i32
    return %c0_i32, %c0_i32_0 : i32, i32
  }
  func.func @transform_1(%arg0: i32) -> (i32, i32) {
    %c0_i32 = arith.constant 0 : i32
    %c0_i32_0 = arith.constant 0 : i32
    %c0_i32_1 = arith.constant 0 : i32
    return %c0_i32, %c0_i32_0 : i32, i32
  }
  func.func @transform_2(%arg0: i32) -> (i32, i32, i32) {
    %c0_i32 = arith.constant 0 : i32
    %c0_i32_0 = arith.constant 0 : i32
    %c0_i32_1 = arith.constant 0 : i32
    %c0_i32_2 = arith.constant 0 : i32
    return %c0_i32, %c0_i32_0, %c0_i32_1 : i32, i32, i32
  }
  func.func @transform_3(%arg0: i32) -> (i32, i32, i32) {
    %c0_i32 = arith.constant 0 : i32
    %c0_i32_0 = arith.constant 0 : i32
    %c0_i32_1 = arith.constant 0 : i32
    %c0_i32_2 = arith.constant 0 : i32
    return %c0_i32, %c0_i32_0, %c0_i32_1 : i32, i32, i32
  }
  func.func @transform_4(%arg0: i32) -> (i32, i32, i32) {
    %c0_i32 = arith.constant 0 : i32
    %c0_i32_0 = arith.constant 0 : i32
    %c0_i32_1 = arith.constant 0 : i32
    %c0_i32_2 = arith.constant 0 : i32
    return %c0_i32, %c0_i32_0, %c0_i32_1 : i32, i32, i32
  }
  func.func @transform_5(%arg0: i32) -> (i32, i32, i32) {
    %c0_i32 = arith.constant 0 : i32
    %c0_i32_0 = arith.constant 0 : i32
    %c0_i32_1 = arith.constant 0 : i32
    %c0_i32_2 = arith.constant 0 : i32
    return %c0_i32, %c0_i32_0, %c0_i32_1 : i32, i32, i32
  }
  func.func @transform_6(%arg0: i32) -> (i32, i32, i32) {
    %c0_i32 = arith.constant 0 : i32
    %c0_i32_0 = arith.constant 0 : i32
    %c0_i32_1 = arith.constant 0 : i32
    %c0_i32_2 = arith.constant 0 : i32
    return %c0_i32, %c0_i32_0, %c0_i32_1 : i32, i32, i32
  }
  func.func @transform_7(%arg0: i32) -> (i32, i32) {
    %c0_i32 = arith.constant 0 : i32
    %c0_i32_0 = arith.constant 0 : i32
    %c0_i32_1 = arith.constant 0 : i32
    return %c0_i32, %c0_i32_0 : i32, i32
  }
  func.func @transform_8(%arg0: i32) -> (i32, i32) {
    %c0_i32 = arith.constant 0 : i32
    %c0_i32_0 = arith.constant 0 : i32
    %c0_i32_1 = arith.constant 0 : i32
    return %c0_i32, %c0_i32_0 : i32, i32
  }
  func.func @transform_9(%arg0: i32) -> (i32, i32) {
    %c0_i32 = arith.constant 0 : i32
    %c0_i32_0 = arith.constant 0 : i32
    %c0_i32_1 = arith.constant 0 : i32
    return %c0_i32, %c0_i32_0 : i32, i32
  }
  func.func @transform_10(%arg0: i32) -> (i32, i32) {
    %c0_i32 = arith.constant 0 : i32
    %c0_i32_0 = arith.constant 0 : i32
    %c0_i32_1 = arith.constant 0 : i32
    return %c0_i32, %c0_i32_0 : i32, i32
  }
  func.func @transform_11(%arg0: i32) -> (i32, i32) {
    %c0_i32 = arith.constant 0 : i32
    %c0_i32_0 = arith.constant 0 : i32
    %c0_i32_1 = arith.constant 0 : i32
    return %c0_i32, %c0_i32_0 : i32, i32
  }
}

</mosaic_0001>

<llo_original>
// kernel: model_forward.1
$region0: #{model_forward.1}
  #allocation0 [shape = 'u32[]', space=smem, size = 0x4, offset = 0x4, fixed_abs, tag = 'smem constant byte address 0x4 - core index']
  #allocation1 [shape = 'u32[72,128]{1,0:T(1,128)}', space=vmem, size = 0x9000, scoped, tag = 'internal scratch']
  #allocation2 [shape = 'f32[160,256]{1,0:T(8,128)}', space=vmem, size = 0x28000, scoped, tag = 'scratch operand']
  #allocation3 [shape = 'f32[160,1]{1,0:T(8,128)}', space=vmem, size = 0x14000, scoped, tag = 'scratch operand']
  %s0 = inlined_call_operand.vmem [shape: f32[32,256], index: 0, kind: input, shape index: {}]
  %s1 = inlined_call_operand.hbm [shape: f32[256,2], index: 1, kind: input, shape index: {}]
  %s2 = inlined_call_operand.hbm [shape: f32[10,160,160], index: 2, kind: input, shape index: {}]
  %s3 = inlined_call_operand.hbm [shape: f32[10,4,32], index: 3, kind: input, shape index: {}]
  %s4 = inlined_call_operand.vmem [shape: f32[10,4,1], index: 4, kind: input, shape index: {}]
  %s5 = inlined_call_operand.vmem [shape: f32[10,32,4], index: 5, kind: input, shape index: {}]
  %s6 = inlined_call_operand.vmem [shape: f32[10,32,1], index: 6, kind: input, shape index: {}]
  %s7 = inlined_call_operand.hbm [shape: f32[8,32], index: 7, kind: input, shape index: {}]
  %s8 = inlined_call_operand.vmem [shape: f32[8,1], index: 8, kind: input, shape index: {}]
  %s9 = inlined_call_operand.hbm [shape: f32[4,8], index: 9, kind: input, shape index: {}]
  %s10 = inlined_call_operand.vmem [shape: f32[4,1], index: 10, kind: input, shape index: {}]
  %s11 = inlined_call_operand.vmem [shape: f32[4,2], index: 11, kind: output, shape index: {}]
  %s12 = sld [smem:[#allocation0]]
  $region81: #{model_forward.1} parent=0
    _
  %s14 = ssub.s32 1, %s12
  %s15 = scalar_select 0, %s14, %s12
  $region1: #{model_forward.1} parent=0
    #allocation4 [shape = 'u8[131072]{0}', space=vmem, size = 0x20000, scoped, tag = 'input window, operand 1, single buffered']
    #allocation5 [shape = 's32[1]{0}', space=sflag, size = 0x4, scoped, tag = 'scoped memory for model_forward.1']
    #allocation6 [shape = 'u8[1638400]{0}', space=vmem, size = 0x190000, scoped, tag = 'input window, operand 2, single buffered']
    #allocation7 [shape = 's32[1]{0}', space=sflag, size = 0x4, scoped, tag = 'scoped memory for model_forward.1']
    #allocation8 [shape = 'u8[20480]{0}', space=vmem, size = 0x5000, scoped, tag = 'input window, operand 3, single buffered']
    #allocation9 [shape = 'u8[4096]{0}', space=vmem, size = 0x1000, scoped, tag = 'input window, operand 7, single buffered']
    #allocation10 [shape = 's32[1]{0}', space=sflag, size = 0x4, scoped, tag = 'scoped memory for model_forward.1']
    #allocation11 [shape = 'u8[2048]{0}', space=vmem, size = 0x800, scoped, tag = 'input window, operand 9, single buffered']
    %16 = vsyncpa [#allocation5], 0
    %17 = vsyncpa [#allocation7], 0
    %18 = vsyncpa [#allocation10], 0
    // Predicated region
    $region2: #{model_forward.1} parent=1 // pred_check
      _
    $region3: #{model_forward.1} parent=1 // pred_check_branch
      %20 = sbr.rel (0) target = $region5
    $region4: #{model_forward.1} parent=1 // pred_region
      _
    $region5: #{model_forward.1} parent=1 // pred_fallthru
      _
    // Predicated region
    $region6: #{model_forward.1} parent=1 // pred_check
      _
    $region7: #{model_forward.1} parent=1 // pred_check_branch
      %22 = sbr.rel (0) target = $region9
    $region8: #{model_forward.1} parent=1 // pred_region
      %24 = vsyncadd [#allocation5], 0
      %s25 = sshll.u32 %s1, 4
      %s26 = int_to_ptr.hbm [resolvable:$true] %s25
      %s27 = sshll.u32 [#allocation4], 4
      %s28 = int_to_ptr.vmem [resolvable:$true] %s27
      %33 = dma.hbm_to_vmem [thread:$0]  %s26, 4096, %s28, [#allocation5], 128, 128, 8
    $region9: #{model_forward.1} parent=1 // pred_fallthru
      _
    // Predicated region
    $region10: #{model_forward.1} parent=1 // pred_check
      _
    $region11: #{model_forward.1} parent=1 // pred_check_branch
      %35 = sbr.rel (0) target = $region13
    $region12: #{model_forward.1} parent=1 // pred_region
      %37 = vsyncadd [#allocation7], 0
      %s38 = sshll.u32 %s2, 4
      %s39 = int_to_ptr.hbm [resolvable:$true] %s38
      %s40 = sshll.u32 [#allocation6], 4
      %s41 = int_to_ptr.vmem [resolvable:$true] %s40
      %46 = dma.hbm_to_vmem [thread:$0]  %s39, 51200, %s41, [#allocation7], 256, 256, 16
    $region13: #{model_forward.1} parent=1 // pred_fallthru
      _
    // Predicated region
    $region14: #{model_forward.1} parent=1 // pred_check
      _
    $region15: #{model_forward.1} parent=1 // pred_check_branch
      %48 = sbr.rel (0) target = $region17
    $region16: #{model_forward.1} parent=1 // pred_region
      %50 = vsyncadd [#allocation7], 0
      %s51 = sshll.u32 %s3, 4
      %s52 = int_to_ptr.hbm [resolvable:$true] %s51
      %s53 = sshll.u32 [#allocation8], 4
      %s54 = int_to_ptr.vmem [resolvable:$true] %s53
      %59 = dma.hbm_to_vmem [thread:$0]  %s52, 640, %s54, [#allocation7], 64, 64, 4
    $region17: #{model_forward.1} parent=1 // pred_fallthru
      _
    // Predicated region
    $region18: #{model_forward.1} parent=1 // pred_check
      _
    $region19: #{model_forward.1} parent=1 // pred_check_branch
      %61 = sbr.rel (0) target = $region21
    $region20: #{model_forward.1} parent=1 // pred_region
      _
    $region21: #{model_forward.1} parent=1 // pred_fallthru
      _
    // Predicated region
    $region22: #{model_forward.1} parent=1 // pred_check
      _
    $region23: #{model_forward.1} parent=1 // pred_check_branch
      %63 = sbr.rel (0) target = $region25
    $region24: #{model_forward.1} parent=1 // pred_region
      _
    $region25: #{model_forward.1} parent=1 // pred_fallthru
      _
    // Predicated region
    $region26: #{model_forward.1} parent=1 // pred_check
      _
    $region27: #{model_forward.1} parent=1 // pred_check_branch
      %65 = sbr.rel (0) target = $region29
    $region28: #{model_forward.1} parent=1 // pred_region
      _
    $region29: #{model_forward.1} parent=1 // pred_fallthru
      _
    // Predicated region
    $region30: #{model_forward.1} parent=1 // pred_check
      _
    $region31: #{model_forward.1} parent=1 // pred_check_branch
      %67 = sbr.rel (0) target = $region33
    $region32: #{model_forward.1} parent=1 // pred_region
      %69 = vsyncadd [#allocation10], 0
      %s71 = sshll.u32 %s7, 4
      %s72 = int_to_ptr.hbm [resolvable:$true] %s71
      %s73 = sshll.u32 [#allocation9], 4
      %s74 = int_to_ptr.vmem [resolvable:$true] %s73
      %76 = dma.hbm_to_vmem [thread:$0]  %s72, 128, %s74, [#allocation10]
    $region33: #{model_forward.1} parent=1 // pred_fallthru
      _
    // Predicated region
    $region34: #{model_forward.1} parent=1 // pred_check
      _
    $region35: #{model_forward.1} parent=1 // pred_check_branch
      %78 = sbr.rel (0) target = $region37
    $region36: #{model_forward.1} parent=1 // pred_region
      _
    $region37: #{model_forward.1} parent=1 // pred_fallthru
      _
    // Predicated region
    $region38: #{model_forward.1} parent=1 // pred_check
      _
    $region39: #{model_forward.1} parent=1 // pred_check_branch
      %80 = sbr.rel (0) target = $region41
    $region40: #{model_forward.1} parent=1 // pred_region
      %82 = vsyncadd [#allocation10], 0
      %s84 = sshll.u32 %s9, 4
      %s85 = int_to_ptr.hbm [resolvable:$true] %s84
      %s86 = sshll.u32 [#allocation11], 4
      %s87 = int_to_ptr.vmem [resolvable:$true] %s86
      %89 = dma.hbm_to_vmem [thread:$0]  %s85, 64, %s87, [#allocation10]
    $region41: #{model_forward.1} parent=1 // pred_fallthru
      _
    // Predicated region
    $region42: #{model_forward.1} parent=1 // pred_check
      _
    $region43: #{model_forward.1} parent=1 // pred_check_branch
      %91 = sbr.rel (0) target = $region45
    $region44: #{model_forward.1} parent=1 // pred_region
      _
    $region45: #{model_forward.1} parent=1 // pred_fallthru
      _
    // Predicated region
    $region46: #{model_forward.1} parent=1 // pred_check
      _
    $region47: #{model_forward.1} parent=1 // pred_check_branch
      %93 = sbr.rel (0) target = $region49
    $region48: #{model_forward.1} parent=1 // pred_region
      %95 = dma.done [#allocation5], 4096
    $region49: #{model_forward.1} parent=1 // pred_fallthru
      _
    // Predicated region
    $region50: #{model_forward.1} parent=1 // pred_check
      _
    $region51: #{model_forward.1} parent=1 // pred_check_branch
      %97 = sbr.rel (0) target = $region53
    $region52: #{model_forward.1} parent=1 // pred_region
      %99 = dma.done [#allocation7], 51200
    $region53: #{model_forward.1} parent=1 // pred_fallthru
      _
    // Predicated region
    $region54: #{model_forward.1} parent=1 // pred_check
      _
    $region55: #{model_forward.1} parent=1 // pred_check_branch
      %101 = sbr.rel (0) target = $region57
    $region56: #{model_forward.1} parent=1 // pred_region
      %103 = dma.done [#allocation7], 640
    $region57: #{model_forward.1} parent=1 // pred_fallthru
      _
    // Predicated region
    $region58: #{model_forward.1} parent=1 // pred_check
      _
    $region59: #{model_forward.1} parent=1 // pred_check_branch
      %105 = sbr.rel (0) target = $region61
    $region60: #{model_forward.1} parent=1 // pred_region
      %107 = dma.done [#allocation10], 128
    $region61: #{model_forward.1} parent=1 // pred_fallthru
      _
    // Predicated region
    $region62: #{model_forward.1} parent=1 // pred_check
      _
    $region63: #{model_forward.1} parent=1 // pred_check_branch
      %109 = sbr.rel (0) target = $region65
    $region64: #{model_forward.1} parent=1 // pred_region
      %111 = dma.done [#allocation10], 64
    $region65: #{model_forward.1} parent=1 // pred_fallthru
      _
    %v112 = vld [vmem:[%s0] sm:$0xff]
    %v113 = vld [vmem:[%s0 + $0x8] sm:$0xff]
    %v114 = vld [vmem:[%s0 + $0x10] sm:$0xff]
    %v115 = vld [vmem:[%s0 + $0x18] sm:$0xff]
    %v116 = vld [vmem:[%s0 + $0x20] sm:$0xff]
    %v117 = vld [vmem:[%s0 + $0x28] sm:$0xff]
    %v118 = vld [vmem:[%s0 + $0x30] sm:$0xff]
    %v119 = vld [vmem:[%s0 + $0x38] sm:$0xff]
    %120 = vst [vmem:[#allocation2] sm:$0xff] %v112
    %121 = vst [vmem:[#allocation2 + $0x8] sm:$0xff] %v113
    %122 = vst [vmem:[#allocation2 + $0x10] sm:$0xff] %v114
    %123 = vst [vmem:[#allocation2 + $0x18] sm:$0xff] %v115
    %124 = vst [vmem:[#allocation2 + $0x20] sm:$0xff] %v116
    %125 = vst [vmem:[#allocation2 + $0x28] sm:$0xff] %v117
    %126 = vst [vmem:[#allocation2 + $0x30] sm:$0xff] %v118
    %127 = vst [vmem:[#allocation2 + $0x38] sm:$0xff] %v119
    %128 = vst [vmem:[#allocation2 + $0x40] sm:$0xff] %v112
    %129 = vst [vmem:[#allocation2 + $0x48] sm:$0xff] %v113
    %130 = vst [vmem:[#allocation2 + $0x50] sm:$0xff] %v114
    %131 = vst [vmem:[#allocation2 + $0x58] sm:$0xff] %v115
    %132 = vst [vmem:[#allocation2 + $0x60] sm:$0xff] %v116
    %133 = vst [vmem:[#allocation2 + $0x68] sm:$0xff] %v117
    %134 = vst [vmem:[#allocation2 + $0x70] sm:$0xff] %v118
    %135 = vst [vmem:[#allocation2 + $0x78] sm:$0xff] %v119
    %136 = vst [vmem:[#allocation2 + $0x80] sm:$0xff] %v112
    %137 = vst [vmem:[#allocation2 + $0x88] sm:$0xff] %v113
    %138 = vst [vmem:[#allocation2 + $0x90] sm:$0xff] %v114
    %139 = vst [vmem:[#allocation2 + $0x98] sm:$0xff] %v115
    %140 = vst [vmem:[#allocation2 + $0xa0] sm:$0xff] %v116
    %141 = vst [vmem:[#allocation2 + $0xa8] sm:$0xff] %v117
    %142 = vst [vmem:[#allocation2 + $0xb0] sm:$0xff] %v118
    %143 = vst [vmem:[#allocation2 + $0xb8] sm:$0xff] %v119
    %144 = vst [vmem:[#allocation2 + $0xc0] sm:$0xff] %v112
    %145 = vst [vmem:[#allocation2 + $0xc8] sm:$0xff] %v113
    %146 = vst [vmem:[#allocation2 + $0xd0] sm:$0xff] %v114
    %147 = vst [vmem:[#allocation2 + $0xd8] sm:$0xff] %v115
    %148 = vst [vmem:[#allocation2 + $0xe0] sm:$0xff] %v116
    %149 = vst [vmem:[#allocation2 + $0xe8] sm:$0xff] %v117
    %150 = vst [vmem:[#allocation2 + $0xf0] sm:$0xff] %v118
    %151 = vst [vmem:[#allocation2 + $0xf8] sm:$0xff] %v119
    %152 = vst [vmem:[#allocation2 + $0x100] sm:$0xff] %v112
    %153 = vst [vmem:[#allocation2 + $0x108] sm:$0xff] %v113
    %154 = vst [vmem:[#allocation2 + $0x110] sm:$0xff] %v114
    %155 = vst [vmem:[#allocation2 + $0x118] sm:$0xff] %v115
    %156 = vst [vmem:[#allocation2 + $0x120] sm:$0xff] %v116
    %157 = vst [vmem:[#allocation2 + $0x128] sm:$0xff] %v117
    %158 = vst [vmem:[#allocation2 + $0x130] sm:$0xff] %v118
    %159 = vst [vmem:[#allocation2 + $0x138] sm:$0xff] %v119
    %v160 = vld [vmem:[#allocation4] sm:$0xff]
    %v161 = vld [vmem:[#allocation4 + $0x8] sm:$0xff]
    %v162 = vld [vmem:[#allocation4 + $0x10] sm:$0xff]
    %v163 = vld [vmem:[#allocation4 + $0x18] sm:$0xff]
    %v164 = vld [vmem:[#allocation4 + $0x20] sm:$0xff]
    %v165 = vld [vmem:[#allocation4 + $0x28] sm:$0xff]
    %v166 = vld [vmem:[#allocation4 + $0x30] sm:$0xff]
    %v167 = vld [vmem:[#allocation4 + $0x38] sm:$0xff]
    %v168 = vld [vmem:[#allocation4 + $0x40] sm:$0xff]
    %v169 = vld [vmem:[#allocation4 + $0x48] sm:$0xff]
    %v170 = vld [vmem:[#allocation4 + $0x50] sm:$0xff]
    %v171 = vld [vmem:[#allocation4 + $0x58] sm:$0xff]
    %v172 = vld [vmem:[#allocation4 + $0x60] sm:$0xff]
    %v173 = vld [vmem:[#allocation4 + $0x68] sm:$0xff]
    %v174 = vld [vmem:[#allocation4 + $0x70] sm:$0xff]
    %v175 = vld [vmem:[#allocation4 + $0x78] sm:$0xff]
    %v176 = vld [vmem:[#allocation4 + $0x80] sm:$0xff]
    %v177 = vld [vmem:[#allocation4 + $0x88] sm:$0xff]
    %v178 = vld [vmem:[#allocation4 + $0x90] sm:$0xff]
    %v179 = vld [vmem:[#allocation4 + $0x98] sm:$0xff]
    %v180 = vld [vmem:[#allocation4 + $0xa0] sm:$0xff]
    %v181 = vld [vmem:[#allocation4 + $0xa8] sm:$0xff]
    %v182 = vld [vmem:[#allocation4 + $0xb0] sm:$0xff]
    %v183 = vld [vmem:[#allocation4 + $0xb8] sm:$0xff]
    %v184 = vld [vmem:[#allocation4 + $0xc0] sm:$0xff]
    %v185 = vld [vmem:[#allocation4 + $0xc8] sm:$0xff]
    %v186 = vld [vmem:[#allocation4 + $0xd0] sm:$0xff]
    %v187 = vld [vmem:[#allocation4 + $0xd8] sm:$0xff]
    %v188 = vld [vmem:[#allocation4 + $0xe0] sm:$0xff]
    %v189 = vld [vmem:[#allocation4 + $0xe8] sm:$0xff]
    %v190 = vld [vmem:[#allocation4 + $0xf0] sm:$0xff]
    %v191 = vld [vmem:[#allocation4 + $0xf8] sm:$0xff]
    loop: start=0, step=1, limit=10
    $region66: #{model_forward.1} parent=1 // loop_pre_header
      _
    $region67: #{model_forward.1} parent=1 // loop_header
      %s193 = sphi 0, %s197
      %p194 = scmp.ge.s32.totalorder %s193, 10
    $region68: #{model_forward.1} parent=1 // loop_header_branch
      %196 = sbr.rel (%p194) target = $region72
    $region69: #{model_forward.1} parent=1 // loop_body
      %v198 = vld [vmem:[#allocation2] sm:$0xff]
      %v199 = vld [vmem:[#allocation2 + $0x8] sm:$0xff]
      %v200 = vld [vmem:[#allocation2 + $0x10] sm:$0xff]
      %v201 = vld [vmem:[#allocation2 + $0x18] sm:$0xff]
      %v202 = vld [vmem:[#allocation2 + $0x20] sm:$0xff]
      %v203 = vld [vmem:[#allocation2 + $0x28] sm:$0xff]
      %v204 = vld [vmem:[#allocation2 + $0x30] sm:$0xff]
      %v205 = vld [vmem:[#allocation2 + $0x38] sm:$0xff]
      %v206 = vld [vmem:[#allocation2 + $0x40] sm:$0xff]
      %v207 = vld [vmem:[#allocation2 + $0x48] sm:$0xff]
      %v208 = vld [vmem:[#allocation2 + $0x50] sm:$0xff]
      %v209 = vld [vmem:[#allocation2 + $0x58] sm:$0xff]
      %v210 = vld [vmem:[#allocation2 + $0x60] sm:$0xff]
      %v211 = vld [vmem:[#allocation2 + $0x68] sm:$0xff]
      %v212 = vld [vmem:[#allocation2 + $0x70] sm:$0xff]
      %v213 = vld [vmem:[#allocation2 + $0x78] sm:$0xff]
      %v214 = vld [vmem:[#allocation2 + $0x80] sm:$0xff]
      %v215 = vld [vmem:[#allocation2 + $0x88] sm:$0xff]
      %v216 = vld [vmem:[#allocation2 + $0x90] sm:$0xff]
      %v217 = vld [vmem:[#allocation2 + $0x98] sm:$0xff]
      %v218 = vld [vmem:[#allocation2 + $0xa0] sm:$0xff]
      %v219 = vld [vmem:[#allocation2 + $0xa8] sm:$0xff]
      %v220 = vld [vmem:[#allocation2 + $0xb0] sm:$0xff]
      %v221 = vld [vmem:[#allocation2 + $0xb8] sm:$0xff]
      %v222 = vld [vmem:[#allocation2 + $0xc0] sm:$0xff]
      %v223 = vld [vmem:[#allocation2 + $0xc8] sm:$0xff]
      %v224 = vld [vmem:[#allocation2 + $0xd0] sm:$0xff]
      %v225 = vld [vmem:[#allocation2 + $0xd8] sm:$0xff]
      %v226 = vld [vmem:[#allocation2 + $0xe0] sm:$0xff]
      %v227 = vld [vmem:[#allocation2 + $0xe8] sm:$0xff]
      %v228 = vld [vmem:[#allocation2 + $0xf0] sm:$0xff]
      %v229 = vld [vmem:[#allocation2 + $0xf8] sm:$0xff]
      %v230 = vld [vmem:[#allocation2 + $0x100] sm:$0xff]
      %v231 = vld [vmem:[#allocation2 + $0x108] sm:$0xff]
      %v232 = vld [vmem:[#allocation2 + $0x110] sm:$0xff]
      %v233 = vld [vmem:[#allocation2 + $0x118] sm:$0xff]
      %v234 = vld [vmem:[#allocation2 + $0x120] sm:$0xff]
      %v235 = vld [vmem:[#allocation2 + $0x128] sm:$0xff]
      %v236 = vld [vmem:[#allocation2 + $0x130] sm:$0xff]
      %v237 = vld [vmem:[#allocation2 + $0x138] sm:$0xff]
      %238 = vmatpush.msra.mxu0 %v175
      %239 = vmatpush.msra.mxu0 %v174
      %240 = vmatpush.msra.mxu0 %v173
      %241 = vmatpush.msra.mxu0 %v172
      %242 = vmatpush.msra.mxu0 %v171
      %243 = vmatpush.msra.mxu0 %v170
      %244 = vmatpush.msra.mxu0 %v169
      %245 = vmatpush.msra.mxu0 %v168
      %246 = vmatpush.msra.mxu0 %v167
      %247 = vmatpush.msra.mxu0 %v166
      %248 = vmatpush.msra.mxu0 %v165
      %249 = vmatpush.msra.mxu0 %v164
      %250 = vmatpush.msra.mxu0 %v163
      %251 = vmatpush.msra.mxu0 %v162
      %252 = vmatpush.msra.mxu0 %v161
      %253 = vmatpush.msra.mxu0 %v160
      %254 = vmatmul.f32.gmra.mxu0 %v198
      %v255 = vpop.f32.mrf.mxu0
      %v256 = vadd.f32 0.0, %v255
      %257 = vmatmul.f32.gmra.mxu0 %v200
      %v258 = vpop.f32.mrf.mxu0
      %v259 = vadd.f32 0.0, %v258
      %260 = vmatmul.f32.gmra.mxu0 %v202
      %v261 = vpop.f32.mrf.mxu0
      %v262 = vadd.f32 0.0, %v261
      %263 = vmatmul.f32.gmra.mxu0 %v204
      %v264 = vpop.f32.mrf.mxu0
      %v265 = vadd.f32 0.0, %v264
      %266 = vmatmul.f32.gmra.mxu0 %v206
      %v267 = vpop.f32.mrf.mxu0
      %v268 = vadd.f32 0.0, %v267
      %269 = vmatmul.f32.gmra.mxu0 %v208
      %v270 = vpop.f32.mrf.mxu0
      %v271 = vadd.f32 0.0, %v270
      %272 = vmatmul.f32.gmra.mxu0 %v210
      %v273 = vpop.f32.mrf.mxu0
      %v274 = vadd.f32 0.0, %v273
      %275 = vmatmul.f32.gmra.mxu0 %v212
      %v276 = vpop.f32.mrf.mxu0
      %v277 = vadd.f32 0.0, %v276
      %278 = vmatmul.f32.gmra.mxu0 %v214
      %v279 = vpop.f32.mrf.mxu0
      %v280 = vadd.f32 0.0, %v279
      %281 = vmatmul.f32.gmra.mxu0 %v216
      %v282 = vpop.f32.mrf.mxu0
      %v283 = vadd.f32 0.0, %v282
      %284 = vmatmul.f32.gmra.mxu0 %v218
      %v285 = vpop.f32.mrf.mxu0
      %v286 = vadd.f32 0.0, %v285
      %287 = vmatmul.f32.gmra.mxu0 %v220
      %v288 = vpop.f32.mrf.mxu0
      %v289 = vadd.f32 0.0, %v288
      %290 = vmatmul.f32.gmra.mxu0 %v222
      %v291 = vpop.f32.mrf.mxu0
      %v292 = vadd.f32 0.0, %v291
      %293 = vmatmul.f32.gmra.mxu0 %v224
      %v294 = vpop.f32.mrf.mxu0
      %v295 = vadd.f32 0.0, %v294
      %296 = vmatmul.f32.gmra.mxu0 %v226
      %v297 = vpop.f32.mrf.mxu0
      %v298 = vadd.f32 0.0, %v297
      %299 = vmatmul.f32.gmra.mxu0 %v228
      %v300 = vpop.f32.mrf.mxu0
      %v301 = vadd.f32 0.0, %v300
      %302 = vmatmul.f32.gmra.mxu0 %v230
      %v303 = vpop.f32.mrf.mxu0
      %v304 = vadd.f32 0.0, %v303
      %305 = vmatmul.f32.gmra.mxu0 %v232
      %v306 = vpop.f32.mrf.mxu0
      %v307 = vadd.f32 0.0, %v306
      %308 = vmatmul.f32.gmra.mxu0 %v234
      %v309 = vpop.f32.mrf.mxu0
      %v310 = vadd.f32 0.0, %v309
      %311 = vmatmul.f32.gmra.mxu0 %v236
      %v312 = vpop.f32.mrf.mxu0
      %v313 = vadd.f32 0.0, %v312
      %314 = vdwg.mxu0
      %315 = vmatpush.msra.mxu0 %v191
      %316 = vmatpush.msra.mxu0 %v190
      %317 = vmatpush.msra.mxu0 %v189
      %318 = vmatpush.msra.mxu0 %v188
      %319 = vmatpush.msra.mxu0 %v187
      %320 = vmatpush.msra.mxu0 %v186
      %321 = vmatpush.msra.mxu0 %v185
      %322 = vmatpush.msra.mxu0 %v184
      %323 = vmatpush.msra.mxu0 %v183
      %324 = vmatpush.msra.mxu0 %v182
      %325 = vmatpush.msra.mxu0 %v181
      %326 = vmatpush.msra.mxu0 %v180
      %327 = vmatpush.msra.mxu0 %v179
      %328 = vmatpush.msra.mxu0 %v178
      %329 = vmatpush.msra.mxu0 %v177
      %330 = vmatpush.msra.mxu0 %v176
      %331 = vmatmul.f32.gmra.mxu0 %v199
      %v332 = vpop.f32.mrf.mxu0
      %v333 = vadd.f32 %v256, %v332
      %334 = vmatmul.f32.gmra.mxu0 %v201
      %v335 = vpop.f32.mrf.mxu0
      %v336 = vadd.f32 %v259, %v335
      %337 = vmatmul.f32.gmra.mxu0 %v203
      %v338 = vpop.f32.mrf.mxu0
      %v339 = vadd.f32 %v262, %v338
      %340 = vmatmul.f32.gmra.mxu0 %v205
      %v341 = vpop.f32.mrf.mxu0
      %v342 = vadd.f32 %v265, %v341
      %343 = vmatmul.f32.gmra.mxu0 %v207
      %v344 = vpop.f32.mrf.mxu0
      %v345 = vadd.f32 %v268, %v344
      %346 = vmatmul.f32.gmra.mxu0 %v209
      %v347 = vpop.f32.mrf.mxu0
      %v348 = vadd.f32 %v271, %v347
      %349 = vmatmul.f32.gmra.mxu0 %v211
      %v350 = vpop.f32.mrf.mxu0
      %v351 = vadd.f32 %v274, %v350
      %352 = vmatmul.f32.gmra.mxu0 %v213
      %v353 = vpop.f32.mrf.mxu0
      %v354 = vadd.f32 %v277, %v353
      %355 = vmatmul.f32.gmra.mxu0 %v215
      %v356 = vpop.f32.mrf.mxu0
      %v357 = vadd.f32 %v280, %v356
      %358 = vmatmul.f32.gmra.mxu0 %v217
      %v359 = vpop.f32.mrf.mxu0
      %v360 = vadd.f32 %v283, %v359
      %361 = vmatmul.f32.gmra.mxu0 %v219
      %v362 = vpop.f32.mrf.mxu0
      %v363 = vadd.f32 %v286, %v362
      %364 = vmatmul.f32.gmra.mxu0 %v221
      %v365 = vpop.f32.mrf.mxu0
      %v366 = vadd.f32 %v289, %v365
      %367 = vmatmul.f32.gmra.mxu0 %v223
      %v368 = vpop.f32.mrf.mxu0
      %v369 = vadd.f32 %v292, %v368
      %370 = vmatmul.f32.gmra.mxu0 %v225
      %v371 = vpop.f32.mrf.mxu0
      %v372 = vadd.f32 %v295, %v371
      %373 = vmatmul.f32.gmra.mxu0 %v227
      %v374 = vpop.f32.mrf.mxu0
      %v375 = vadd.f32 %v298, %v374
      %376 = vmatmul.f32.gmra.mxu0 %v229
      %v377 = vpop.f32.mrf.mxu0
      %v378 = vadd.f32 %v301, %v377
      %379 = vmatmul.f32.gmra.mxu0 %v231
      %v380 = vpop.f32.mrf.mxu0
      %v381 = vadd.f32 %v304, %v380
      %382 = vmatmul.f32.gmra.mxu0 %v233
      %v383 = vpop.f32.mrf.mxu0
      %v384 = vadd.f32 %v307, %v383
      %385 = vmatmul.f32.gmra.mxu0 %v235
      %v386 = vpop.f32.mrf.mxu0
      %v387 = vadd.f32 %v310, %v386
      %388 = vmatmul.f32.gmra.mxu0 %v237
      %v389 = vpop.f32.mrf.mxu0
      %v390 = vadd.f32 %v313, %v389
      %391 = vdwg.mxu0
      %s392 = smul.u32 %s193, 4
      %s393 = scalar_lea.vmem [#allocation8], %s392
      %v394 = vld [vmem:[%s393] sm:$0xf]
      %s395 = scalar_lea.vmem %s4, %s392
      %v396 = vld [vmem:[%s395] sm:$0xf]
      %s397 = smul.u32 %s193, 32
      %s398 = scalar_lea.vmem %s5, %s397
      %v399 = vld [vmem:[%s398] sm:$0xff]
      %v400 = vld [vmem:[%s398 + $0x8] sm:$0xff]
      %v401 = vld [vmem:[%s398 + $0x10] sm:$0xff]
      %v402 = vld [vmem:[%s398 + $0x18] sm:$0xff]
      %s403 = scalar_lea.vmem %s6, %s397
      %v404 = vld [vmem:[%s403] sm:$0xff]
      %v405 = vld [vmem:[%s403 + $0x8] sm:$0xff]
      %v406 = vld [vmem:[%s403 + $0x10] sm:$0xff]
      %v407 = vld [vmem:[%s403 + $0x18] sm:$0xff]
      %409 = vset.pattern.permute.xlu0 0
      %410 = vperm.xlu0 %409, %v396
      %v411 = vpop.permute.xlu0 %410
      %vm413 = vcmask 261120
      %v415 = vsel %vm413, %v394, 0
      %417 = vmatpush.msra.mxu0 0.0
      %418 = vmatpush.msra.mxu0 0.0
      %419 = vmatpush.msra.mxu0 0.0
      %420 = vmatpush.msra.mxu0 0.0
      %421 = vmatpush.msra.mxu0 0.0
      %422 = vmatpush.msra.mxu0 0.0
      %423 = vmatpush.msra.mxu0 0.0
      %424 = vmatpush.msra.mxu0 0.0
      %425 = vmatpush.msra.mxu0 0.0
      %426 = vmatpush.msra.mxu0 0.0
      %427 = vmatpush.msra.mxu0 0.0
      %428 = vmatpush.msra.mxu0 0.0
      %429 = vmatpush.msra.mxu0 %v342
      %430 = vmatpush.msra.mxu0 %v339
      %431 = vmatpush.msra.mxu0 %v336
      %432 = vmatpush.msra.mxu0 %v333
      %433 = vmatmul.f32.gmra.mxu0 %v415
      %v434 = vpop.f32.mrf.mxu0
      %v435 = vadd.f32 %v411, %v434
      %436 = vdwg.mxu0
      %v437 = vtanh.pop %v435
      %439 = vset.pattern.permute.xlu0 0
      %440 = vperm.xlu0 %439, %v404
      %v441 = vpop.permute.xlu0 %440
      %444 = vset.pattern.permute.xlu0 0
      %445 = vperm.xlu0 %444, %v405
      %v446 = vpop.permute.xlu0 %445
      %449 = vset.pattern.permute.xlu0 0
      %450 = vperm.xlu0 %449, %v406
      %v451 = vpop.permute.xlu0 %450
      %454 = vset.pattern.permute.xlu0 0
      %455 = vperm.xlu0 %454, %v407
      %v456 = vpop.permute.xlu0 %455
      %vm458 = vcmask 31744
      %v460 = vsel %vm458, %v399, 0
      %v463 = vsel %vm458, %v400, 0
      %v466 = vsel %vm458, %v401, 0
      %v469 = vsel %vm458, %v402, 0
      %vm471 = vcmask 1043456
      %v473 = vsel %vm471, %v437, 0
      %475 = vmatpush.msra.mxu0 0.0
      %476 = vmatpush.msra.mxu0 0.0
      %477 = vmatpush.msra.mxu0 0.0
      %478 = vmatpush.msra.mxu0 0.0
      %479 = vmatpush.msra.mxu0 0.0
      %480 = vmatpush.msra.mxu0 0.0
      %481 = vmatpush.msra.mxu0 0.0
      %482 = vmatpush.msra.mxu0 0.0
      %483 = vmatpush.msra.mxu0 0.0
      %484 = vmatpush.msra.mxu0 0.0
      %485 = vmatpush.msra.mxu0 0.0
      %486 = vmatpush.msra.mxu0 0.0
      %487 = vmatpush.msra.mxu0 0.0
      %488 = vmatpush.msra.mxu0 0.0
      %489 = vmatpush.msra.mxu0 0.0
      %490 = vmatpush.msra.mxu0 %v473
      %491 = vmatmul.f32.gmra.mxu0 %v460
      %v492 = vpop.f32.mrf.mxu0
      %v493 = vadd.f32 %v441, %v492
      %494 = vmatmul.f32.gmra.mxu0 %v463
      %v495 = vpop.f32.mrf.mxu0
      %v496 = vadd.f32 %v446, %v495
      %497 = vmatmul.f32.gmra.mxu0 %v466
      %v498 = vpop.f32.mrf.mxu0
      %v499 = vadd.f32 %v451, %v498
      %500 = vmatmul.f32.gmra.mxu0 %v469
      %v501 = vpop.f32.mrf.mxu0
      %v502 = vadd.f32 %v456, %v501
      %503 = vdwg.mxu0
      %vm504 = vcmask 15360
      %v505 = vsel %vm504, %v493, 0.0
      %506 = vadd.xlane.f32.xlu0 %v505
      %v507 = vpop.xlane.xlu0 %506
      %v508 = vsel %vm504, %v496, 0.0
      %509 = vadd.xlane.f32.xlu0 %v508
      %v510 = vpop.xlane.xlu0 %509
      %v511 = vsel %vm504, %v499, 0.0
      %512 = vadd.xlane.f32.xlu0 %v511
      %v513 = vpop.xlane.xlu0 %512
      %v514 = vsel %vm504, %v502, 0.0
      %515 = vadd.xlane.f32.xlu0 %v514
      %v516 = vpop.xlane.xlu0 %515
      %v517 = vrcp.pop 2.0
      %v518 = vmul.f32 2.0, %v517
      %v519 = vsub.f32 1.0, %v518
      %v520 = vmul.f32 %v517, %v519
      %v521 = vadd.f32 %v517, %v520
      %vm522 = vweird.f32 %v517
      %v523 = vsel %vm522, %v517, %v521
      %v524 = vmul.f32 %v507, %v523
      %v525 = vmul.f32 %v510, %v523
      %v526 = vmul.f32 %v513, %v523
      %v527 = vmul.f32 %v516, %v523
      %vm528 = vcmask 7168
      %529 = vst.msk [vmem:[#allocation3] sm:$0xff] %vm528, %v524
      %530 = vst.msk [vmem:[#allocation3 + $0x8] sm:$0xff] %vm528, %v525
      %531 = vst.msk [vmem:[#allocation3 + $0x10] sm:$0xff] %vm528, %v526
      %532 = vst.msk [vmem:[#allocation3 + $0x18] sm:$0xff] %vm528, %v527
      %533 = vmatpush.msra.mxu0 0.0
      %534 = vmatpush.msra.mxu0 0.0
      %535 = vmatpush.msra.mxu0 0.0
      %536 = vmatpush.msra.mxu0 0.0
      %537 = vmatpush.msra.mxu0 0.0
      %538 = vmatpush.msra.mxu0 0.0
      %539 = vmatpush.msra.mxu0 0.0
      %540 = vmatpush.msra.mxu0 0.0
      %541 = vmatpush.msra.mxu0 0.0
      %542 = vmatpush.msra.mxu0 0.0
      %543 = vmatpush.msra.mxu0 0.0
      %544 = vmatpush.msra.mxu0 0.0
      %545 = vmatpush.msra.mxu0 %v354
      %546 = vmatpush.msra.mxu0 %v351
      %547 = vmatpush.msra.mxu0 %v348
      %548 = vmatpush.msra.mxu0 %v345
      %549 = vmatmul.f32.gmra.mxu0 %v415
      %v550 = vpop.f32.mrf.mxu0
      %v551 = vadd.f32 %v411, %v550
      %552 = vdwg.mxu0
      %v553 = vtanh.pop %v551
      %v555 = vsel %vm471, %v553, 0
      %557 = vmatpush.msra.mxu0 0.0
      %558 = vmatpush.msra.mxu0 0.0
      %559 = vmatpush.msra.mxu0 0.0
      %560 = vmatpush.msra.mxu0 0.0
      %561 = vmatpush.msra.mxu0 0.0
      %562 = vmatpush.msra.mxu0 0.0
      %563 = vmatpush.msra.mxu0 0.0
      %564 = vmatpush.msra.mxu0 0.0
      %565 = vmatpush.msra.mxu0 0.0
      %566 = vmatpush.msra.mxu0 0.0
      %567 = vmatpush.msra.mxu0 0.0
      %568 = vmatpush.msra.mxu0 0.0
      %569 = vmatpush.msra.mxu0 0.0
      %570 = vmatpush.msra.mxu0 0.0
      %571 = vmatpush.msra.mxu0 0.0
      %572 = vmatpush.msra.mxu0 %v555
      %573 = vmatmul.f32.gmra.mxu0 %v460
      %v574 = vpop.f32.mrf.mxu0
      %v575 = vadd.f32 %v441, %v574
      %576 = vmatmul.f32.gmra.mxu0 %v463
      %v577 = vpop.f32.mrf.mxu0
      %v578 = vadd.f32 %v446, %v577
      %579 = vmatmul.f32.gmra.mxu0 %v466
      %v580 = vpop.f32.mrf.mxu0
      %v581 = vadd.f32 %v451, %v580
      %582 = vmatmul.f32.gmra.mxu0 %v469
      %v583 = vpop.f32.mrf.mxu0
      %v584 = vadd.f32 %v456, %v583
      %585 = vdwg.mxu0
      %v586 = vsel %vm504, %v575, 0.0
      %587 = vadd.xlane.f32.xlu0 %v586
      %v588 = vpop.xlane.xlu0 %587
      %v589 = vsel %vm504, %v578, 0.0
      %590 = vadd.xlane.f32.xlu0 %v589
      %v591 = vpop.xlane.xlu0 %590
      %v592 = vsel %vm504, %v581, 0.0
      %593 = vadd.xlane.f32.xlu0 %v592
      %v594 = vpop.xlane.xlu0 %593
      %v595 = vsel %vm504, %v584, 0.0
      %596 = vadd.xlane.f32.xlu0 %v595
      %v597 = vpop.xlane.xlu0 %596
      %v598 = vmul.f32 %v588, %v523
      %v599 = vmul.f32 %v591, %v523
      %v600 = vmul.f32 %v594, %v523
      %v601 = vmul.f32 %v597, %v523
      %602 = vst.msk [vmem:[#allocation3 + $0x20] sm:$0xff] %vm528, %v598
      %603 = vst.msk [vmem:[#allocation3 + $0x28] sm:$0xff] %vm528, %v599
      %604 = vst.msk [vmem:[#allocation3 + $0x30] sm:$0xff] %vm528, %v600
      %605 = vst.msk [vmem:[#allocation3 + $0x38] sm:$0xff] %vm528, %v601
      %606 = vmatpush.msra.mxu0 0.0
      %607 = vmatpush.msra.mxu0 0.0
      %608 = vmatpush.msra.mxu0 0.0
      %609 = vmatpush.msra.mxu0 0.0
      %610 = vmatpush.msra.mxu0 0.0
      %611 = vmatpush.msra.mxu0 0.0
      %612 = vmatpush.msra.mxu0 0.0
      %613 = vmatpush.msra.mxu0 0.0
      %614 = vmatpush.msra.mxu0 0.0
      %615 = vmatpush.msra.mxu0 0.0
      %616 = vmatpush.msra.mxu0 0.0
      %617 = vmatpush.msra.mxu0 0.0
      %618 = vmatpush.msra.mxu0 %v366
      %619 = vmatpush.msra.mxu0 %v363
      %620 = vmatpush.msra.mxu0 %v360
      %621 = vmatpush.msra.mxu0 %v357
      %622 = vmatmul.f32.gmra.mxu0 %v415
      %v623 = vpop.f32.mrf.mxu0
      %v624 = vadd.f32 %v411, %v623
      %625 = vdwg.mxu0
      %v626 = vtanh.pop %v624
      %v628 = vsel %vm471, %v626, 0
      %630 = vmatpush.msra.mxu0 0.0
      %631 = vmatpush.msra.mxu0 0.0
      %632 = vmatpush.msra.mxu0 0.0
      %633 = vmatpush.msra.mxu0 0.0
      %634 = vmatpush.msra.mxu0 0.0
      %635 = vmatpush.msra.mxu0 0.0
      %636 = vmatpush.msra.mxu0 0.0
      %637 = vmatpush.msra.mxu0 0.0
      %638 = vmatpush.msra.mxu0 0.0
      %639 = vmatpush.msra.mxu0 0.0
      %640 = vmatpush.msra.mxu0 0.0
      %641 = vmatpush.msra.mxu0 0.0
      %642 = vmatpush.msra.mxu0 0.0
      %643 = vmatpush.msra.mxu0 0.0
      %644 = vmatpush.msra.mxu0 0.0
      %645 = vmatpush.msra.mxu0 %v628
      %646 = vmatmul.f32.gmra.mxu0 %v460
      %v647 = vpop.f32.mrf.mxu0
      %v648 = vadd.f32 %v441, %v647
      %649 = vmatmul.f32.gmra.mxu0 %v463
      %v650 = vpop.f32.mrf.mxu0
      %v651 = vadd.f32 %v446, %v650
      %652 = vmatmul.f32.gmra.mxu0 %v466
      %v653 = vpop.f32.mrf.mxu0
      %v654 = vadd.f32 %v451, %v653
      %655 = vmatmul.f32.gmra.mxu0 %v469
      %v656 = vpop.f32.mrf.mxu0
      %v657 = vadd.f32 %v456, %v656
      %658 = vdwg.mxu0
      %v659 = vsel %vm504, %v648, 0.0
      %660 = vadd.xlane.f32.xlu0 %v659
      %v661 = vpop.xlane.xlu0 %660
      %v662 = vsel %vm504, %v651, 0.0
      %663 = vadd.xlane.f32.xlu0 %v662
      %v664 = vpop.xlane.xlu0 %663
      %v665 = vsel %vm504, %v654, 0.0
      %666 = vadd.xlane.f32.xlu0 %v665
      %v667 = vpop.xlane.xlu0 %666
      %v668 = vsel %vm504, %v657, 0.0
      %669 = vadd.xlane.f32.xlu0 %v668
      %v670 = vpop.xlane.xlu0 %669
      %v671 = vmul.f32 %v661, %v523
      %v672 = vmul.f32 %v664, %v523
      %v673 = vmul.f32 %v667, %v523
      %v674 = vmul.f32 %v670, %v523
      %675 = vst.msk [vmem:[#allocation3 + $0x40] sm:$0xff] %vm528, %v671
      %676 = vst.msk [vmem:[#allocation3 + $0x48] sm:$0xff] %vm528, %v672
      %677 = vst.msk [vmem:[#allocation3 + $0x50] sm:$0xff] %vm528, %v673
      %678 = vst.msk [vmem:[#allocation3 + $0x58] sm:$0xff] %vm528, %v674
      %679 = vmatpush.msra.mxu0 0.0
      %680 = vmatpush.msra.mxu0 0.0
      %681 = vmatpush.msra.mxu0 0.0
      %682 = vmatpush.msra.mxu0 0.0
      %683 = vmatpush.msra.mxu0 0.0
      %684 = vmatpush.msra.mxu0 0.0
      %685 = vmatpush.msra.mxu0 0.0
      %686 = vmatpush.msra.mxu0 0.0
      %687 = vmatpush.msra.mxu0 0.0
      %688 = vmatpush.msra.mxu0 0.0
      %689 = vmatpush.msra.mxu0 0.0
      %690 = vmatpush.msra.mxu0 0.0
      %691 = vmatpush.msra.mxu0 %v378
      %692 = vmatpush.msra.mxu0 %v375
      %693 = vmatpush.msra.mxu0 %v372
      %694 = vmatpush.msra.mxu0 %v369
      %695 = vmatmul.f32.gmra.mxu0 %v415
      %v696 = vpop.f32.mrf.mxu0
      %v697 = vadd.f32 %v411, %v696
      %698 = vdwg.mxu0
      %v699 = vtanh.pop %v697
      %v701 = vsel %vm471, %v699, 0
      %703 = vmatpush.msra.mxu0 0.0
      %704 = vmatpush.msra.mxu0 0.0
      %705 = vmatpush.msra.mxu0 0.0
      %706 = vmatpush.msra.mxu0 0.0
      %707 = vmatpush.msra.mxu0 0.0
      %708 = vmatpush.msra.mxu0 0.0
      %709 = vmatpush.msra.mxu0 0.0
      %710 = vmatpush.msra.mxu0 0.0
      %711 = vmatpush.msra.mxu0 0.0
      %712 = vmatpush.msra.mxu0 0.0
      %713 = vmatpush.msra.mxu0 0.0
      %714 = vmatpush.msra.mxu0 0.0
      %715 = vmatpush.msra.mxu0 0.0
      %716 = vmatpush.msra.mxu0 0.0
      %717 = vmatpush.msra.mxu0 0.0
      %718 = vmatpush.msra.mxu0 %v701
      %719 = vmatmul.f32.gmra.mxu0 %v460
      %v720 = vpop.f32.mrf.mxu0
      %v721 = vadd.f32 %v441, %v720
      %722 = vmatmul.f32.gmra.mxu0 %v463
      %v723 = vpop.f32.mrf.mxu0
      %v724 = vadd.f32 %v446, %v723
      %725 = vmatmul.f32.gmra.mxu0 %v466
      %v726 = vpop.f32.mrf.mxu0
      %v727 = vadd.f32 %v451, %v726
      %728 = vmatmul.f32.gmra.mxu0 %v469
      %v729 = vpop.f32.mrf.mxu0
      %v730 = vadd.f32 %v456, %v729
      %731 = vdwg.mxu0
      %v732 = vsel %vm504, %v721, 0.0
      %733 = vadd.xlane.f32.xlu0 %v732
      %v734 = vpop.xlane.xlu0 %733
      %v735 = vsel %vm504, %v724, 0.0
      %736 = vadd.xlane.f32.xlu0 %v735
      %v737 = vpop.xlane.xlu0 %736
      %v738 = vsel %vm504, %v727, 0.0
      %739 = vadd.xlane.f32.xlu0 %v738
      %v740 = vpop.xlane.xlu0 %739
      %v741 = vsel %vm504, %v730, 0.0
      %742 = vadd.xlane.f32.xlu0 %v741
      %v743 = vpop.xlane.xlu0 %742
      %v744 = vmul.f32 %v734, %v523
      %v745 = vmul.f32 %v737, %v523
      %v746 = vmul.f32 %v740, %v523
      %v747 = vmul.f32 %v743, %v523
      %748 = vst.msk [vmem:[#allocation3 + $0x60] sm:$0xff] %vm528, %v744
      %749 = vst.msk [vmem:[#allocation3 + $0x68] sm:$0xff] %vm528, %v745
      %750 = vst.msk [vmem:[#allocation3 + $0x70] sm:$0xff] %vm528, %v746
      %751 = vst.msk [vmem:[#allocation3 + $0x78] sm:$0xff] %vm528, %v747
      %752 = vmatpush.msra.mxu0 0.0
      %753 = vmatpush.msra.mxu0 0.0
      %754 = vmatpush.msra.mxu0 0.0
      %755 = vmatpush.msra.mxu0 0.0
      %756 = vmatpush.msra.mxu0 0.0
      %757 = vmatpush.msra.mxu0 0.0
      %758 = vmatpush.msra.mxu0 0.0
      %759 = vmatpush.msra.mxu0 0.0
      %760 = vmatpush.msra.mxu0 0.0
      %761 = vmatpush.msra.mxu0 0.0
      %762 = vmatpush.msra.mxu0 0.0
      %763 = vmatpush.msra.mxu0 0.0
      %764 = vmatpush.msra.mxu0 %v390
      %765 = vmatpush.msra.mxu0 %v387
      %766 = vmatpush.msra.mxu0 %v384
      %767 = vmatpush.msra.mxu0 %v381
      %768 = vmatmul.f32.gmra.mxu0 %v415
      %v769 = vpop.f32.mrf.mxu0
      %v770 = vadd.f32 %v411, %v769
      %771 = vdwg.mxu0
      %v772 = vtanh.pop %v770
      %v774 = vsel %vm471, %v772, 0
      %776 = vmatpush.msra.mxu0 0.0
      %777 = vmatpush.msra.mxu0 0.0
      %778 = vmatpush.msra.mxu0 0.0
      %779 = vmatpush.msra.mxu0 0.0
      %780 = vmatpush.msra.mxu0 0.0
      %781 = vmatpush.msra.mxu0 0.0
      %782 = vmatpush.msra.mxu0 0.0
      %783 = vmatpush.msra.mxu0 0.0
      %784 = vmatpush.msra.mxu0 0.0
      %785 = vmatpush.msra.mxu0 0.0
      %786 = vmatpush.msra.mxu0 0.0
      %787 = vmatpush.msra.mxu0 0.0
      %788 = vmatpush.msra.mxu0 0.0
      %789 = vmatpush.msra.mxu0 0.0
      %790 = vmatpush.msra.mxu0 0.0
      %791 = vmatpush.msra.mxu0 %v774
      %792 = vmatmul.f32.gmra.mxu0 %v460
      %v793 = vpop.f32.mrf.mxu0
      %v794 = vadd.f32 %v441, %v793
      %795 = vmatmul.f32.gmra.mxu0 %v463
      %v796 = vpop.f32.mrf.mxu0
      %v797 = vadd.f32 %v446, %v796
      %798 = vmatmul.f32.gmra.mxu0 %v466
      %v799 = vpop.f32.mrf.mxu0
      %v800 = vadd.f32 %v451, %v799
      %801 = vmatmul.f32.gmra.mxu0 %v469
      %v802 = vpop.f32.mrf.mxu0
      %v803 = vadd.f32 %v456, %v802
      %804 = vdwg.mxu0
      %v805 = vsel %vm504, %v794, 0.0
      %806 = vadd.xlane.f32.xlu0 %v805
      %v807 = vpop.xlane.xlu0 %806
      %v808 = vsel %vm504, %v797, 0.0
      %809 = vadd.xlane.f32.xlu0 %v808
      %v810 = vpop.xlane.xlu0 %809
      %v811 = vsel %vm504, %v800, 0.0
      %812 = vadd.xlane.f32.xlu0 %v811
      %v813 = vpop.xlane.xlu0 %812
      %v814 = vsel %vm504, %v803, 0.0
      %815 = vadd.xlane.f32.xlu0 %v814
      %v816 = vpop.xlane.xlu0 %815
      %v817 = vmul.f32 %v807, %v523
      %v818 = vmul.f32 %v810, %v523
      %v819 = vmul.f32 %v813, %v523
      %v820 = vmul.f32 %v816, %v523
      %821 = vst.msk [vmem:[#allocation3 + $0x80] sm:$0xff] %vm528, %v817
      %822 = vst.msk [vmem:[#allocation3 + $0x88] sm:$0xff] %vm528, %v818
      %823 = vst.msk [vmem:[#allocation3 + $0x90] sm:$0xff] %vm528, %v819
      %824 = vst.msk [vmem:[#allocation3 + $0x98] sm:$0xff] %vm528, %v820
      %s825 = smul.u32 %s193, 40
      %s826 = smul.addr %s825, 8
      %s827 = scalar_lea.vmem [#allocation6], %s826
      %v828 = vld [vmem:[%s827] sm:$0xff]
      %v829 = vld [vmem:[%s827 + $0x8] sm:$0xff]
      %v830 = vld [vmem:[%s827 + $0x10] sm:$0xff]
      %v831 = vld [vmem:[%s827 + $0x18] sm:$0xff]
      %v832 = vld [vmem:[%s827 + $0x20] sm:$0xff]
      %v833 = vld [vmem:[%s827 + $0x28] sm:$0xff]
      %v834 = vld [vmem:[%s827 + $0x30] sm:$0xff]
      %v835 = vld [vmem:[%s827 + $0x38] sm:$0xff]
      %v836 = vld [vmem:[%s827 + $0x40] sm:$0xff]
      %v837 = vld [vmem:[%s827 + $0x48] sm:$0xff]
      %v838 = vld [vmem:[%s827 + $0x50] sm:$0xff]
      %v839 = vld [vmem:[%s827 + $0x58] sm:$0xff]
      %v840 = vld [vmem:[%s827 + $0x60] sm:$0xff]
      %v841 = vld [vmem:[%s827 + $0x68] sm:$0xff]
      %v842 = vld [vmem:[%s827 + $0x70] sm:$0xff]
      %v843 = vld [vmem:[%s827 + $0x78] sm:$0xff]
      %v844 = vld [vmem:[%s827 + $0x80] sm:$0xff]
      %v845 = vld [vmem:[%s827 + $0x88] sm:$0xff]
      %v846 = vld [vmem:[%s827 + $0x90] sm:$0xff]
      %v847 = vld [vmem:[%s827 + $0x98] sm:$0xff]
      %v848 = vld [vmem:[%s827 + $0xa0] sm:$0xff]
      %v849 = vld [vmem:[%s827 + $0xa8] sm:$0xff]
      %v850 = vld [vmem:[%s827 + $0xb0] sm:$0xff]
      %v851 = vld [vmem:[%s827 + $0xb8] sm:$0xff]
      %v852 = vld [vmem:[%s827 + $0xc0] sm:$0xff]
      %v853 = vld [vmem:[%s827 + $0xc8] sm:$0xff]
      %v854 = vld [vmem:[%s827 + $0xd0] sm:$0xff]
      %v855 = vld [vmem:[%s827 + $0xd8] sm:$0xff]
      %v856 = vld [vmem:[%s827 + $0xe0] sm:$0xff]
      %v857 = vld [vmem:[%s827 + $0xe8] sm:$0xff]
      %v858 = vld [vmem:[%s827 + $0xf0] sm:$0xff]
      %v859 = vld [vmem:[%s827 + $0xf8] sm:$0xff]
      %v860 = vld [vmem:[%s827 + $0x100] sm:$0xff]
      %v861 = vld [vmem:[%s827 + $0x108] sm:$0xff]
      %v862 = vld [vmem:[%s827 + $0x110] sm:$0xff]
      %v863 = vld [vmem:[%s827 + $0x118] sm:$0xff]
      %v864 = vld [vmem:[%s827 + $0x120] sm:$0xff]
      %v865 = vld [vmem:[%s827 + $0x128] sm:$0xff]
      %v866 = vld [vmem:[%s827 + $0x130] sm:$0xff]
      %v867 = vld [vmem:[%s827 + $0x138] sm:$0xff]
      %v868 = vld [vmem:[#allocation3] sm:$0xff]
      %v869 = vld [vmem:[#allocation3 + $0x8] sm:$0xff]
      %v870 = vld [vmem:[#allocation3 + $0x10] sm:$0xff]
      %v871 = vld [vmem:[#allocation3 + $0x18] sm:$0xff]
      %v872 = vld [vmem:[#allocation3 + $0x20] sm:$0xff]
      %v873 = vld [vmem:[#allocation3 + $0x28] sm:$0xff]
      %v874 = vld [vmem:[#allocation3 + $0x30] sm:$0xff]
      %v875 = vld [vmem:[#allocation3 + $0x38] sm:$0xff]
      %v876 = vld [vmem:[#allocation3 + $0x40] sm:$0xff]
      %v877 = vld [vmem:[#allocation3 + $0x48] sm:$0xff]
      %v878 = vld [vmem:[#allocation3 + $0x50] sm:$0xff]
      %v879 = vld [vmem:[#allocation3 + $0x58] sm:$0xff]
      %v880 = vld [vmem:[#allocation3 + $0x60] sm:$0xff]
      %v881 = vld [vmem:[#allocation3 + $0x68] sm:$0xff]
      %v882 = vld [vmem:[#allocation3 + $0x70] sm:$0xff]
      %v883 = vld [vmem:[#allocation3 + $0x78] sm:$0xff]
      %v884 = vld [vmem:[#allocation3 + $0x80] sm:$0xff]
      %v885 = vld [vmem:[#allocation3 + $0x88] sm:$0xff]
      %v886 = vld [vmem:[#allocation3 + $0x90] sm:$0xff]
      %v887 = vld [vmem:[#allocation3 + $0x98] sm:$0xff]
      %889 = vset.pattern.permute.xlu0 0
      %890 = vperm.xlu0 %889, %v868
      %v891 = vpop.permute.xlu0 %890
      %894 = vset.pattern.permute.xlu0 0
      %895 = vperm.xlu0 %894, %v869
      %v896 = vpop.permute.xlu0 %895
      %899 = vset.pattern.permute.xlu0 0
      %900 = vperm.xlu0 %899, %v870
      %v901 = vpop.permute.xlu0 %900
      %904 = vset.pattern.permute.xlu0 0
      %905 = vperm.xlu0 %904, %v871
      %v906 = vpop.permute.xlu0 %905
      %909 = vset.pattern.permute.xlu0 0
      %910 = vperm.xlu0 %909, %v872
      %v911 = vpop.permute.xlu0 %910
      %914 = vset.pattern.permute.xlu0 0
      %915 = vperm.xlu0 %914, %v873
      %v916 = vpop.permute.xlu0 %915
      %919 = vset.pattern.permute.xlu0 0
      %920 = vperm.xlu0 %919, %v874
      %v921 = vpop.permute.xlu0 %920
      %924 = vset.pattern.permute.xlu0 0
      %925 = vperm.xlu0 %924, %v875
      %v926 = vpop.permute.xlu0 %925
      %929 = vset.pattern.permute.xlu0 0
      %930 = vperm.xlu0 %929, %v876
      %v931 = vpop.permute.xlu0 %930
      %934 = vset.pattern.permute.xlu0 0
      %935 = vperm.xlu0 %934, %v877
      %v936 = vpop.permute.xlu0 %935
      %939 = vset.pattern.permute.xlu0 0
      %940 = vperm.xlu0 %939, %v878
      %v941 = vpop.permute.xlu0 %940
      %944 = vset.pattern.permute.xlu0 0
      %945 = vperm.xlu0 %944, %v879
      %v946 = vpop.permute.xlu0 %945
      %949 = vset.pattern.permute.xlu0 0
      %950 = vperm.xlu0 %949, %v880
      %v951 = vpop.permute.xlu0 %950
      %954 = vset.pattern.permute.xlu0 0
      %955 = vperm.xlu0 %954, %v881
      %v956 = vpop.permute.xlu0 %955
      %959 = vset.pattern.permute.xlu0 0
      %960 = vperm.xlu0 %959, %v882
      %v961 = vpop.permute.xlu0 %960
      %964 = vset.pattern.permute.xlu0 0
      %965 = vperm.xlu0 %964, %v883
      %v966 = vpop.permute.xlu0 %965
      %969 = vset.pattern.permute.xlu0 0
      %970 = vperm.xlu0 %969, %v884
      %v971 = vpop.permute.xlu0 %970
      %974 = vset.pattern.permute.xlu0 0
      %975 = vperm.xlu0 %974, %v885
      %v976 = vpop.permute.xlu0 %975
      %979 = vset.pattern.permute.xlu0 0
      %980 = vperm.xlu0 %979, %v886
      %v981 = vpop.permute.xlu0 %980
      %984 = vset.pattern.permute.xlu0 0
      %985 = vperm.xlu0 %984, %v887
      %v986 = vpop.permute.xlu0 %985
      %v988 = vmul.f32 %v891, %v198
      %v989 = vmul.f32 %v891, %v199
      %v990 = vmul.f32 %v896, %v200
      %v991 = vmul.f32 %v896, %v201
      %v992 = vmul.f32 %v901, %v202
      %v993 = vmul.f32 %v901, %v203
      %v994 = vmul.f32 %v906, %v204
      %v995 = vmul.f32 %v906, %v205
      %v996 = vmul.f32 %v911, %v206
      %v997 = vmul.f32 %v911, %v207
      %v998 = vmul.f32 %v916, %v208
      %v999 = vmul.f32 %v916, %v209
      %v1000 = vmul.f32 %v921, %v210
      %v1001 = vmul.f32 %v921, %v211
      %v1002 = vmul.f32 %v926, %v212
      %v1003 = vmul.f32 %v926, %v213
      %v1004 = vmul.f32 %v931, %v214
      %v1005 = vmul.f32 %v931, %v215
      %v1006 = vmul.f32 %v936, %v216
      %v1007 = vmul.f32 %v936, %v217
      %v1008 = vmul.f32 %v941, %v218
      %v1009 = vmul.f32 %v941, %v219
      %v1010 = vmul.f32 %v946, %v220
      %v1011 = vmul.f32 %v946, %v221
      %v1012 = vmul.f32 %v951, %v222
      %v1013 = vmul.f32 %v951, %v223
      %v1014 = vmul.f32 %v956, %v224
      %v1015 = vmul.f32 %v956, %v225
      %v1016 = vmul.f32 %v961, %v226
      %v1017 = vmul.f32 %v961, %v227
      %v1018 = vmul.f32 %v966, %v228
      %v1019 = vmul.f32 %v966, %v229
      %v1020 = vmul.f32 %v971, %v230
      %v1021 = vmul.f32 %v971, %v231
      %v1022 = vmul.f32 %v976, %v232
      %v1023 = vmul.f32 %v976, %v233
      %v1024 = vmul.f32 %v981, %v234
      %v1025 = vmul.f32 %v981, %v235
      %v1026 = vmul.f32 %v986, %v236
      %v1027 = vmul.f32 %v986, %v237
      %v1029 = vsel %vm413, %v829, 0
      %v1032 = vsel %vm413, %v831, 0
      %v1035 = vsel %vm413, %v833, 0
      %v1038 = vsel %vm413, %v835, 0
      %v1041 = vsel %vm413, %v837, 0
      %v1044 = vsel %vm413, %v839, 0
      %v1047 = vsel %vm413, %v841, 0
      %v1050 = vsel %vm413, %v843, 0
      %v1053 = vsel %vm413, %v845, 0
      %v1056 = vsel %vm413, %v847, 0
      %v1059 = vsel %vm413, %v849, 0
      %v1062 = vsel %vm413, %v851, 0
      %v1065 = vsel %vm413, %v853, 0
      %v1068 = vsel %vm413, %v855, 0
      %v1071 = vsel %vm413, %v857, 0
      %v1074 = vsel %vm413, %v859, 0
      %v1077 = vsel %vm413, %v861, 0
      %v1080 = vsel %vm413, %v863, 0
      %v1083 = vsel %vm413, %v865, 0
      %v1086 = vsel %vm413, %v867, 0
      %1088 = vmatpush.msra.mxu0 %v1018
      %1089 = vmatpush.msra.mxu0 %v1016
      %1090 = vmatpush.msra.mxu0 %v1014
      %1091 = vmatpush.msra.mxu0 %v1012
      %1092 = vmatpush.msra.mxu0 %v1010
      %1093 = vmatpush.msra.mxu0 %v1008
      %1094 = vmatpush.msra.mxu0 %v1006
      %1095 = vmatpush.msra.mxu0 %v1004
      %1096 = vmatpush.msra.mxu0 %v1002
      %1097 = vmatpush.msra.mxu0 %v1000
      %1098 = vmatpush.msra.mxu0 %v998
      %1099 = vmatpush.msra.mxu0 %v996
      %1100 = vmatpush.msra.mxu0 %v994
      %1101 = vmatpush.msra.mxu0 %v992
      %1102 = vmatpush.msra.mxu0 %v990
      %1103 = vmatpush.msra.mxu0 %v988
      %1104 = vmatmul.f32.gmra.mxu0 %v828
      %v1105 = vpop.f32.mrf.mxu0
      %v1106 = vadd.f32 0.0, %v1105
      %1107 = vmatmul.f32.gmra.mxu0 %v830
      %v1108 = vpop.f32.mrf.mxu0
      %v1109 = vadd.f32 0.0, %v1108
      %1110 = vmatmul.f32.gmra.mxu0 %v832
      %v1111 = vpop.f32.mrf.mxu0
      %v1112 = vadd.f32 0.0, %v1111
      %1113 = vmatmul.f32.gmra.mxu0 %v834
      %v1114 = vpop.f32.mrf.mxu0
      %v1115 = vadd.f32 0.0, %v1114
      %1116 = vmatmul.f32.gmra.mxu0 %v836
      %v1117 = vpop.f32.mrf.mxu0
      %v1118 = vadd.f32 0.0, %v1117
      %1119 = vmatmul.f32.gmra.mxu0 %v838
      %v1120 = vpop.f32.mrf.mxu0
      %v1121 = vadd.f32 0.0, %v1120
      %1122 = vmatmul.f32.gmra.mxu0 %v840
      %v1123 = vpop.f32.mrf.mxu0
      %v1124 = vadd.f32 0.0, %v1123
      %1125 = vmatmul.f32.gmra.mxu0 %v842
      %v1126 = vpop.f32.mrf.mxu0
      %v1127 = vadd.f32 0.0, %v1126
      %1128 = vmatmul.f32.gmra.mxu0 %v844
      %v1129 = vpop.f32.mrf.mxu0
      %v1130 = vadd.f32 0.0, %v1129
      %1131 = vmatmul.f32.gmra.mxu0 %v846
      %v1132 = vpop.f32.mrf.mxu0
      %v1133 = vadd.f32 0.0, %v1132
      %1134 = vmatmul.f32.gmra.mxu0 %v848
      %v1135 = vpop.f32.mrf.mxu0
      %v1136 = vadd.f32 0.0, %v1135
      %1137 = vmatmul.f32.gmra.mxu0 %v850
      %v1138 = vpop.f32.mrf.mxu0
      %v1139 = vadd.f32 0.0, %v1138
      %1140 = vmatmul.f32.gmra.mxu0 %v852
      %v1141 = vpop.f32.mrf.mxu0
      %v1142 = vadd.f32 0.0, %v1141
      %1143 = vmatmul.f32.gmra.mxu0 %v854
      %v1144 = vpop.f32.mrf.mxu0
      %v1145 = vadd.f32 0.0, %v1144
      %1146 = vmatmul.f32.gmra.mxu0 %v856
      %v1147 = vpop.f32.mrf.mxu0
      %v1148 = vadd.f32 0.0, %v1147
      %1149 = vmatmul.f32.gmra.mxu0 %v858
      %v1150 = vpop.f32.mrf.mxu0
      %v1151 = vadd.f32 0.0, %v1150
      %1152 = vmatmul.f32.gmra.mxu0 %v860
      %v1153 = vpop.f32.mrf.mxu0
      %v1154 = vadd.f32 0.0, %v1153
      %1155 = vmatmul.f32.gmra.mxu0 %v862
      %v1156 = vpop.f32.mrf.mxu0
      %v1157 = vadd.f32 0.0, %v1156
      %1158 = vmatmul.f32.gmra.mxu0 %v864
      %v1159 = vpop.f32.mrf.mxu0
      %v1160 = vadd.f32 0.0, %v1159
      %1161 = vmatmul.f32.gmra.mxu0 %v866
      %v1162 = vpop.f32.mrf.mxu0
      %v1163 = vadd.f32 0.0, %v1162
      %1164 = vdwg.mxu0
      %1165 = vmatpush.msra.mxu0 0.0
      %1166 = vmatpush.msra.mxu0 0.0
      %1167 = vmatpush.msra.mxu0 0.0
      %1168 = vmatpush.msra.mxu0 0.0
      %1169 = vmatpush.msra.mxu0 0.0
      %1170 = vmatpush.msra.mxu0 0.0
      %1171 = vmatpush.msra.mxu0 0.0
      %1172 = vmatpush.msra.mxu0 0.0
      %1173 = vmatpush.msra.mxu0 0.0
      %1174 = vmatpush.msra.mxu0 0.0
      %1175 = vmatpush.msra.mxu0 0.0
      %1176 = vmatpush.msra.mxu0 0.0
      %1177 = vmatpush.msra.mxu0 %v1026
      %1178 = vmatpush.msra.mxu0 %v1024
      %1179 = vmatpush.msra.mxu0 %v1022
      %1180 = vmatpush.msra.mxu0 %v1020
      %1181 = vmatmul.f32.gmra.mxu0 %v1029
      %v1182 = vpop.f32.mrf.mxu0
      %v1183 = vadd.f32 %v1106, %v1182
      %1184 = vmatmul.f32.gmra.mxu0 %v1032
      %v1185 = vpop.f32.mrf.mxu0
      %v1186 = vadd.f32 %v1109, %v1185
      %1187 = vmatmul.f32.gmra.mxu0 %v1035
      %v1188 = vpop.f32.mrf.mxu0
      %v1189 = vadd.f32 %v1112, %v1188
      %1190 = vmatmul.f32.gmra.mxu0 %v1038
      %v1191 = vpop.f32.mrf.mxu0
      %v1192 = vadd.f32 %v1115, %v1191
      %1193 = vmatmul.f32.gmra.mxu0 %v1041
      %v1194 = vpop.f32.mrf.mxu0
      %v1195 = vadd.f32 %v1118, %v1194
      %1196 = vmatmul.f32.gmra.mxu0 %v1044
      %v1197 = vpop.f32.mrf.mxu0
      %v1198 = vadd.f32 %v1121, %v1197
      %1199 = vmatmul.f32.gmra.mxu0 %v1047
      %v1200 = vpop.f32.mrf.mxu0
      %v1201 = vadd.f32 %v1124, %v1200
      %1202 = vmatmul.f32.gmra.mxu0 %v1050
      %v1203 = vpop.f32.mrf.mxu0
      %v1204 = vadd.f32 %v1127, %v1203
      %1205 = vmatmul.f32.gmra.mxu0 %v1053
      %v1206 = vpop.f32.mrf.mxu0
      %v1207 = vadd.f32 %v1130, %v1206
      %1208 = vmatmul.f32.gmra.mxu0 %v1056
      %v1209 = vpop.f32.mrf.mxu0
      %v1210 = vadd.f32 %v1133, %v1209
      %1211 = vmatmul.f32.gmra.mxu0 %v1059
      %v1212 = vpop.f32.mrf.mxu0
      %v1213 = vadd.f32 %v1136, %v1212
      %1214 = vmatmul.f32.gmra.mxu0 %v1062
      %v1215 = vpop.f32.mrf.mxu0
      %v1216 = vadd.f32 %v1139, %v1215
      %1217 = vmatmul.f32.gmra.mxu0 %v1065
      %v1218 = vpop.f32.mrf.mxu0
      %v1219 = vadd.f32 %v1142, %v1218
      %1220 = vmatmul.f32.gmra.mxu0 %v1068
      %v1221 = vpop.f32.mrf.mxu0
      %v1222 = vadd.f32 %v1145, %v1221
      %1223 = vmatmul.f32.gmra.mxu0 %v1071
      %v1224 = vpop.f32.mrf.mxu0
      %v1225 = vadd.f32 %v1148, %v1224
      %1226 = vmatmul.f32.gmra.mxu0 %v1074
      %v1227 = vpop.f32.mrf.mxu0
      %v1228 = vadd.f32 %v1151, %v1227
      %1229 = vmatmul.f32.gmra.mxu0 %v1077
      %v1230 = vpop.f32.mrf.mxu0
      %v1231 = vadd.f32 %v1154, %v1230
      %1232 = vmatmul.f32.gmra.mxu0 %v1080
      %v1233 = vpop.f32.mrf.mxu0
      %v1234 = vadd.f32 %v1157, %v1233
      %1235 = vmatmul.f32.gmra.mxu0 %v1083
      %v1236 = vpop.f32.mrf.mxu0
      %v1237 = vadd.f32 %v1160, %v1236
      %1238 = vmatmul.f32.gmra.mxu0 %v1086
      %v1239 = vpop.f32.mrf.mxu0
      %v1240 = vadd.f32 %v1163, %v1239
      %1241 = vdwg.mxu0
      %1242 = vmatpush.msra.mxu0 %v1019
      %1243 = vmatpush.msra.mxu0 %v1017
      %1244 = vmatpush.msra.mxu0 %v1015
      %1245 = vmatpush.msra.mxu0 %v1013
      %1246 = vmatpush.msra.mxu0 %v1011
      %1247 = vmatpush.msra.mxu0 %v1009
      %1248 = vmatpush.msra.mxu0 %v1007
      %1249 = vmatpush.msra.mxu0 %v1005
      %1250 = vmatpush.msra.mxu0 %v1003
      %1251 = vmatpush.msra.mxu0 %v1001
      %1252 = vmatpush.msra.mxu0 %v999
      %1253 = vmatpush.msra.mxu0 %v997
      %1254 = vmatpush.msra.mxu0 %v995
      %1255 = vmatpush.msra.mxu0 %v993
      %1256 = vmatpush.msra.mxu0 %v991
      %1257 = vmatpush.msra.mxu0 %v989
      %1258 = vmatmul.f32.gmra.mxu0 %v828
      %v1259 = vpop.f32.mrf.mxu0
      %v1260 = vadd.f32 0.0, %v1259
      %1261 = vmatmul.f32.gmra.mxu0 %v830
      %v1262 = vpop.f32.mrf.mxu0
      %v1263 = vadd.f32 0.0, %v1262
      %1264 = vmatmul.f32.gmra.mxu0 %v832
      %v1265 = vpop.f32.mrf.mxu0
      %v1266 = vadd.f32 0.0, %v1265
      %1267 = vmatmul.f32.gmra.mxu0 %v834
      %v1268 = vpop.f32.mrf.mxu0
      %v1269 = vadd.f32 0.0, %v1268
      %1270 = vmatmul.f32.gmra.mxu0 %v836
      %v1271 = vpop.f32.mrf.mxu0
      %v1272 = vadd.f32 0.0, %v1271
      %1273 = vmatmul.f32.gmra.mxu0 %v838
      %v1274 = vpop.f32.mrf.mxu0
      %v1275 = vadd.f32 0.0, %v1274
      %1276 = vmatmul.f32.gmra.mxu0 %v840
      %v1277 = vpop.f32.mrf.mxu0
      %v1278 = vadd.f32 0.0, %v1277
      %1279 = vmatmul.f32.gmra.mxu0 %v842
      %v1280 = vpop.f32.mrf.mxu0
      %v1281 = vadd.f32 0.0, %v1280
      %1282 = vmatmul.f32.gmra.mxu0 %v844
      %v1283 = vpop.f32.mrf.mxu0
      %v1284 = vadd.f32 0.0, %v1283
      %1285 = vmatmul.f32.gmra.mxu0 %v846
      %v1286 = vpop.f32.mrf.mxu0
      %v1287 = vadd.f32 0.0, %v1286
      %1288 = vmatmul.f32.gmra.mxu0 %v848
      %v1289 = vpop.f32.mrf.mxu0
      %v1290 = vadd.f32 0.0, %v1289
      %1291 = vmatmul.f32.gmra.mxu0 %v850
      %v1292 = vpop.f32.mrf.mxu0
      %v1293 = vadd.f32 0.0, %v1292
      %1294 = vmatmul.f32.gmra.mxu0 %v852
      %v1295 = vpop.f32.mrf.mxu0
      %v1296 = vadd.f32 0.0, %v1295
      %1297 = vmatmul.f32.gmra.mxu0 %v854
      %v1298 = vpop.f32.mrf.mxu0
      %v1299 = vadd.f32 0.0, %v1298
      %1300 = vmatmul.f32.gmra.mxu0 %v856
      %v1301 = vpop.f32.mrf.mxu0
      %v1302 = vadd.f32 0.0, %v1301
      %1303 = vmatmul.f32.gmra.mxu0 %v858
      %v1304 = vpop.f32.mrf.mxu0
      %v1305 = vadd.f32 0.0, %v1304
      %1306 = vmatmul.f32.gmra.mxu0 %v860
      %v1307 = vpop.f32.mrf.mxu0
      %v1308 = vadd.f32 0.0, %v1307
      %1309 = vmatmul.f32.gmra.mxu0 %v862
      %v1310 = vpop.f32.mrf.mxu0
      %v1311 = vadd.f32 0.0, %v1310
      %1312 = vmatmul.f32.gmra.mxu0 %v864
      %v1313 = vpop.f32.mrf.mxu0
      %v1314 = vadd.f32 0.0, %v1313
      %1315 = vmatmul.f32.gmra.mxu0 %v866
      %v1316 = vpop.f32.mrf.mxu0
      %v1317 = vadd.f32 0.0, %v1316
      %1318 = vdwg.mxu0
      %1319 = vmatpush.msra.mxu0 0.0
      %1320 = vmatpush.msra.mxu0 0.0
      %1321 = vmatpush.msra.mxu0 0.0
      %1322 = vmatpush.msra.mxu0 0.0
      %1323 = vmatpush.msra.mxu0 0.0
      %1324 = vmatpush.msra.mxu0 0.0
      %1325 = vmatpush.msra.mxu0 0.0
      %1326 = vmatpush.msra.mxu0 0.0
      %1327 = vmatpush.msra.mxu0 0.0
      %1328 = vmatpush.msra.mxu0 0.0
      %1329 = vmatpush.msra.mxu0 0.0
      %1330 = vmatpush.msra.mxu0 0.0
      %1331 = vmatpush.msra.mxu0 %v1027
      %1332 = vmatpush.msra.mxu0 %v1025
      %1333 = vmatpush.msra.mxu0 %v1023
      %1334 = vmatpush.msra.mxu0 %v1021
      %1335 = vmatmul.f32.gmra.mxu0 %v1029
      %v1336 = vpop.f32.mrf.mxu0
      %v1337 = vadd.f32 %v1260, %v1336
      %1338 = vmatmul.f32.gmra.mxu0 %v1032
      %v1339 = vpop.f32.mrf.mxu0
      %v1340 = vadd.f32 %v1263, %v1339
      %1341 = vmatmul.f32.gmra.mxu0 %v1035
      %v1342 = vpop.f32.mrf.mxu0
      %v1343 = vadd.f32 %v1266, %v1342
      %1344 = vmatmul.f32.gmra.mxu0 %v1038
      %v1345 = vpop.f32.mrf.mxu0
      %v1346 = vadd.f32 %v1269, %v1345
      %1347 = vmatmul.f32.gmra.mxu0 %v1041
      %v1348 = vpop.f32.mrf.mxu0
      %v1349 = vadd.f32 %v1272, %v1348
      %1350 = vmatmul.f32.gmra.mxu0 %v1044
      %v1351 = vpop.f32.mrf.mxu0
      %v1352 = vadd.f32 %v1275, %v1351
      %1353 = vmatmul.f32.gmra.mxu0 %v1047
      %v1354 = vpop.f32.mrf.mxu0
      %v1355 = vadd.f32 %v1278, %v1354
      %1356 = vmatmul.f32.gmra.mxu0 %v1050
      %v1357 = vpop.f32.mrf.mxu0
      %v1358 = vadd.f32 %v1281, %v1357
      %1359 = vmatmul.f32.gmra.mxu0 %v1053
      %v1360 = vpop.f32.mrf.mxu0
      %v1361 = vadd.f32 %v1284, %v1360
      %1362 = vmatmul.f32.gmra.mxu0 %v1056
      %v1363 = vpop.f32.mrf.mxu0
      %v1364 = vadd.f32 %v1287, %v1363
      %1365 = vmatmul.f32.gmra.mxu0 %v1059
      %v1366 = vpop.f32.mrf.mxu0
      %v1367 = vadd.f32 %v1290, %v1366
      %1368 = vmatmul.f32.gmra.mxu0 %v1062
      %v1369 = vpop.f32.mrf.mxu0
      %v1370 = vadd.f32 %v1293, %v1369
      %1371 = vmatmul.f32.gmra.mxu0 %v1065
      %v1372 = vpop.f32.mrf.mxu0
      %v1373 = vadd.f32 %v1296, %v1372
      %1374 = vmatmul.f32.gmra.mxu0 %v1068
      %v1375 = vpop.f32.mrf.mxu0
      %v1376 = vadd.f32 %v1299, %v1375
      %1377 = vmatmul.f32.gmra.mxu0 %v1071
      %v1378 = vpop.f32.mrf.mxu0
      %v1379 = vadd.f32 %v1302, %v1378
      %1380 = vmatmul.f32.gmra.mxu0 %v1074
      %v1381 = vpop.f32.mrf.mxu0
      %v1382 = vadd.f32 %v1305, %v1381
      %1383 = vmatmul.f32.gmra.mxu0 %v1077
      %v1384 = vpop.f32.mrf.mxu0
      %v1385 = vadd.f32 %v1308, %v1384
      %1386 = vmatmul.f32.gmra.mxu0 %v1080
      %v1387 = vpop.f32.mrf.mxu0
      %v1388 = vadd.f32 %v1311, %v1387
      %1389 = vmatmul.f32.gmra.mxu0 %v1083
      %v1390 = vpop.f32.mrf.mxu0
      %v1391 = vadd.f32 %v1314, %v1390
      %1392 = vmatmul.f32.gmra.mxu0 %v1086
      %v1393 = vpop.f32.mrf.mxu0
      %v1394 = vadd.f32 %v1317, %v1393
      %1395 = vdwg.mxu0
      %v1396 = vmax.f32 %v1183, 0.0
      %v1397 = vmax.f32 %v1337, 0.0
      %v1398 = vmax.f32 %v1186, 0.0
      %v1399 = vmax.f32 %v1340, 0.0
      %v1400 = vmax.f32 %v1189, 0.0
      %v1401 = vmax.f32 %v1343, 0.0
      %v1402 = vmax.f32 %v1192, 0.0
      %v1403 = vmax.f32 %v1346, 0.0
      %v1404 = vmax.f32 %v1195, 0.0
      %v1405 = vmax.f32 %v1349, 0.0
      %v1406 = vmax.f32 %v1198, 0.0
      %v1407 = vmax.f32 %v1352, 0.0
      %v1408 = vmax.f32 %v1201, 0.0
      %v1409 = vmax.f32 %v1355, 0.0
      %v1410 = vmax.f32 %v1204, 0.0
      %v1411 = vmax.f32 %v1358, 0.0
      %v1412 = vmax.f32 %v1207, 0.0
      %v1413 = vmax.f32 %v1361, 0.0
      %v1414 = vmax.f32 %v1210, 0.0
      %v1415 = vmax.f32 %v1364, 0.0
      %v1416 = vmax.f32 %v1213, 0.0
      %v1417 = vmax.f32 %v1367, 0.0
      %v1418 = vmax.f32 %v1216, 0.0
      %v1419 = vmax.f32 %v1370, 0.0
      %v1420 = vmax.f32 %v1219, 0.0
      %v1421 = vmax.f32 %v1373, 0.0
      %v1422 = vmax.f32 %v1222, 0.0
      %v1423 = vmax.f32 %v1376, 0.0
      %v1424 = vmax.f32 %v1225, 0.0
      %v1425 = vmax.f32 %v1379, 0.0
      %v1426 = vmax.f32 %v1228, 0.0
      %v1427 = vmax.f32 %v1382, 0.0
      %v1428 = vmax.f32 %v1231, 0.0
      %v1429 = vmax.f32 %v1385, 0.0
      %v1430 = vmax.f32 %v1234, 0.0
      %v1431 = vmax.f32 %v1388, 0.0
      %v1432 = vmax.f32 %v1237, 0.0
      %v1433 = vmax.f32 %v1391, 0.0
      %v1434 = vmax.f32 %v1240, 0.0
      %v1435 = vmax.f32 %v1394, 0.0
      %1436 = vst [vmem:[#allocation2] sm:$0xff] %v1396
      %1437 = vst [vmem:[#allocation2 + $0x8] sm:$0xff] %v1397
      %1438 = vst [vmem:[#allocation2 + $0x10] sm:$0xff] %v1398
      %1439 = vst [vmem:[#allocation2 + $0x18] sm:$0xff] %v1399
      %1440 = vst [vmem:[#allocation2 + $0x20] sm:$0xff] %v1400
      %1441 = vst [vmem:[#allocation2 + $0x28] sm:$0xff] %v1401
      %1442 = vst [vmem:[#allocation2 + $0x30] sm:$0xff] %v1402
      %1443 = vst [vmem:[#allocation2 + $0x38] sm:$0xff] %v1403
      %1444 = vst [vmem:[#allocation2 + $0x40] sm:$0xff] %v1404
      %1445 = vst [vmem:[#allocation2 + $0x48] sm:$0xff] %v1405
      %1446 = vst [vmem:[#allocation2 + $0x50] sm:$0xff] %v1406
      %1447 = vst [vmem:[#allocation2 + $0x58] sm:$0xff] %v1407
      %1448 = vst [vmem:[#allocation2 + $0x60] sm:$0xff] %v1408
      %1449 = vst [vmem:[#allocation2 + $0x68] sm:$0xff] %v1409
      %1450 = vst [vmem:[#allocation2 + $0x70] sm:$0xff] %v1410
      %1451 = vst [vmem:[#allocation2 + $0x78] sm:$0xff] %v1411
      %1452 = vst [vmem:[#allocation2 + $0x80] sm:$0xff] %v1412
      %1453 = vst [vmem:[#allocation2 + $0x88] sm:$0xff] %v1413
      %1454 = vst [vmem:[#allocation2 + $0x90] sm:$0xff] %v1414
      %1455 = vst [vmem:[#allocation2 + $0x98] sm:$0xff] %v1415
      %1456 = vst [vmem:[#allocation2 + $0xa0] sm:$0xff] %v1416
      %1457 = vst [vmem:[#allocation2 + $0xa8] sm:$0xff] %v1417
      %1458 = vst [vmem:[#allocation2 + $0xb0] sm:$0xff] %v1418
      %1459 = vst [vmem:[#allocation2 + $0xb8] sm:$0xff] %v1419
      %1460 = vst [vmem:[#allocation2 + $0xc0] sm:$0xff] %v1420
      %1461 = vst [vmem:[#allocation2 + $0xc8] sm:$0xff] %v1421
      %1462 = vst [vmem:[#allocation2 + $0xd0] sm:$0xff] %v1422
      %1463 = vst [vmem:[#allocation2 + $0xd8] sm:$0xff] %v1423
      %1464 = vst [vmem:[#allocation2 + $0xe0] sm:$0xff] %v1424
      %1465 = vst [vmem:[#allocation2 + $0xe8] sm:$0xff] %v1425
      %1466 = vst [vmem:[#allocation2 + $0xf0] sm:$0xff] %v1426
      %1467 = vst [vmem:[#allocation2 + $0xf8] sm:$0xff] %v1427
      %1468 = vst [vmem:[#allocation2 + $0x100] sm:$0xff] %v1428
      %1469 = vst [vmem:[#allocation2 + $0x108] sm:$0xff] %v1429
      %1470 = vst [vmem:[#allocation2 + $0x110] sm:$0xff] %v1430
      %1471 = vst [vmem:[#allocation2 + $0x118] sm:$0xff] %v1431
      %1472 = vst [vmem:[#allocation2 + $0x120] sm:$0xff] %v1432
      %1473 = vst [vmem:[#allocation2 + $0x128] sm:$0xff] %v1433
      %1474 = vst [vmem:[#allocation2 + $0x130] sm:$0xff] %v1434
      %1475 = vst [vmem:[#allocation2 + $0x138] sm:$0xff] %v1435
    $region70: #{model_forward.1} parent=1 // loop_footer
      %s197 = sadd.s32 1, %s193
    $region71: #{model_forward.1} parent=1 // loop_footer_branch
      %192 = sbr.rel target = $region67
    $region72: #{model_forward.1} parent=1 // loop_exit
      _
    %v1476 = vld [vmem:[#allocation2] sm:$0xff]
    %v1477 = vld [vmem:[#allocation2 + $0x8] sm:$0xff]
    %v1478 = vld [vmem:[#allocation2 + $0x10] sm:$0xff]
    %v1479 = vld [vmem:[#allocation2 + $0x18] sm:$0xff]
    %v1480 = vld [vmem:[#allocation2 + $0x20] sm:$0xff]
    %v1481 = vld [vmem:[#allocation2 + $0x28] sm:$0xff]
    %v1482 = vld [vmem:[#allocation2 + $0x30] sm:$0xff]
    %v1483 = vld [vmem:[#allocation2 + $0x38] sm:$0xff]
    %v1484 = vld [vmem:[#allocation2 + $0x40] sm:$0xff]
    %v1485 = vld [vmem:[#allocation2 + $0x48] sm:$0xff]
    %v1486 = vld [vmem:[#allocation2 + $0x50] sm:$0xff]
    %v1487 = vld [vmem:[#allocation2 + $0x58] sm:$0xff]
    %v1488 = vld [vmem:[#allocation2 + $0x60] sm:$0xff]
    %v1489 = vld [vmem:[#allocation2 + $0x68] sm:$0xff]
    %v1490 = vld [vmem:[#allocation2 + $0x70] sm:$0xff]
    %v1491 = vld [vmem:[#allocation2 + $0x78] sm:$0xff]
    %v1492 = vld [vmem:[#allocation2 + $0x80] sm:$0xff]
    %v1493 = vld [vmem:[#allocation2 + $0x88] sm:$0xff]
    %v1494 = vld [vmem:[#allocation2 + $0x90] sm:$0xff]
    %v1495 = vld [vmem:[#allocation2 + $0x98] sm:$0xff]
    %v1496 = vld [vmem:[#allocation2 + $0xa0] sm:$0xff]
    %v1497 = vld [vmem:[#allocation2 + $0xa8] sm:$0xff]
    %v1498 = vld [vmem:[#allocation2 + $0xb0] sm:$0xff]
    %v1499 = vld [vmem:[#allocation2 + $0xb8] sm:$0xff]
    %v1500 = vld [vmem:[#allocation2 + $0xc0] sm:$0xff]
    %v1501 = vld [vmem:[#allocation2 + $0xc8] sm:$0xff]
    %v1502 = vld [vmem:[#allocation2 + $0xd0] sm:$0xff]
    %v1503 = vld [vmem:[#allocation2 + $0xd8] sm:$0xff]
    %v1504 = vld [vmem:[#allocation2 + $0xe0] sm:$0xff]
    %v1505 = vld [vmem:[#allocation2 + $0xe8] sm:$0xff]
    %v1506 = vld [vmem:[#allocation2 + $0xf0] sm:$0xff]
    %v1507 = vld [vmem:[#allocation2 + $0xf8] sm:$0xff]
    %v1508 = vld [vmem:[#allocation2 + $0x100] sm:$0xff]
    %v1509 = vld [vmem:[#allocation2 + $0x108] sm:$0xff]
    %v1510 = vld [vmem:[#allocation2 + $0x110] sm:$0xff]
    %v1511 = vld [vmem:[#allocation2 + $0x118] sm:$0xff]
    %v1512 = vld [vmem:[#allocation2 + $0x120] sm:$0xff]
    %v1513 = vld [vmem:[#allocation2 + $0x128] sm:$0xff]
    %v1514 = vld [vmem:[#allocation2 + $0x130] sm:$0xff]
    %v1515 = vld [vmem:[#allocation2 + $0x138] sm:$0xff]
    %1516 = vmatpush.msra.mxu0 %v175
    %1517 = vmatpush.msra.mxu0 %v174
    %1518 = vmatpush.msra.mxu0 %v173
    %1519 = vmatpush.msra.mxu0 %v172
    %1520 = vmatpush.msra.mxu0 %v171
    %1521 = vmatpush.msra.mxu0 %v170
    %1522 = vmatpush.msra.mxu0 %v169
    %1523 = vmatpush.msra.mxu0 %v168
    %1524 = vmatpush.msra.mxu0 %v167
    %1525 = vmatpush.msra.mxu0 %v166
    %1526 = vmatpush.msra.mxu0 %v165
    %1527 = vmatpush.msra.mxu0 %v164
    %1528 = vmatpush.msra.mxu0 %v163
    %1529 = vmatpush.msra.mxu0 %v162
    %1530 = vmatpush.msra.mxu0 %v161
    %1531 = vmatpush.msra.mxu0 %v160
    %1532 = vmatmul.f32.gmra.mxu0 %v1476
    %v1533 = vpop.f32.mrf.mxu0
    %v1534 = vadd.f32 0.0, %v1533
    %1535 = vmatmul.f32.gmra.mxu0 %v1478
    %v1536 = vpop.f32.mrf.mxu0
    %v1537 = vadd.f32 0.0, %v1536
    %1538 = vmatmul.f32.gmra.mxu0 %v1480
    %v1539 = vpop.f32.mrf.mxu0
    %v1540 = vadd.f32 0.0, %v1539
    %1541 = vmatmul.f32.gmra.mxu0 %v1482
    %v1542 = vpop.f32.mrf.mxu0
    %v1543 = vadd.f32 0.0, %v1542
    %1544 = vmatmul.f32.gmra.mxu0 %v1484
    %v1545 = vpop.f32.mrf.mxu0
    %v1546 = vadd.f32 0.0, %v1545
    %1547 = vmatmul.f32.gmra.mxu0 %v1486
    %v1548 = vpop.f32.mrf.mxu0
    %v1549 = vadd.f32 0.0, %v1548
    %1550 = vmatmul.f32.gmra.mxu0 %v1488
    %v1551 = vpop.f32.mrf.mxu0
    %v1552 = vadd.f32 0.0, %v1551
    %1553 = vmatmul.f32.gmra.mxu0 %v1490
    %v1554 = vpop.f32.mrf.mxu0
    %v1555 = vadd.f32 0.0, %v1554
    %1556 = vmatmul.f32.gmra.mxu0 %v1492
    %v1557 = vpop.f32.mrf.mxu0
    %v1558 = vadd.f32 0.0, %v1557
    %1559 = vmatmul.f32.gmra.mxu0 %v1494
    %v1560 = vpop.f32.mrf.mxu0
    %v1561 = vadd.f32 0.0, %v1560
    %1562 = vmatmul.f32.gmra.mxu0 %v1496
    %v1563 = vpop.f32.mrf.mxu0
    %v1564 = vadd.f32 0.0, %v1563
    %1565 = vmatmul.f32.gmra.mxu0 %v1498
    %v1566 = vpop.f32.mrf.mxu0
    %v1567 = vadd.f32 0.0, %v1566
    %1568 = vmatmul.f32.gmra.mxu0 %v1500
    %v1569 = vpop.f32.mrf.mxu0
    %v1570 = vadd.f32 0.0, %v1569
    %1571 = vmatmul.f32.gmra.mxu0 %v1502
    %v1572 = vpop.f32.mrf.mxu0
    %v1573 = vadd.f32 0.0, %v1572
    %1574 = vmatmul.f32.gmra.mxu0 %v1504
    %v1575 = vpop.f32.mrf.mxu0
    %v1576 = vadd.f32 0.0, %v1575
    %1577 = vmatmul.f32.gmra.mxu0 %v1506
    %v1578 = vpop.f32.mrf.mxu0
    %v1579 = vadd.f32 0.0, %v1578
    %1580 = vmatmul.f32.gmra.mxu0 %v1508
    %v1581 = vpop.f32.mrf.mxu0
    %v1582 = vadd.f32 0.0, %v1581
    %1583 = vmatmul.f32.gmra.mxu0 %v1510
    %v1584 = vpop.f32.mrf.mxu0
    %v1585 = vadd.f32 0.0, %v1584
    %1586 = vmatmul.f32.gmra.mxu0 %v1512
    %v1587 = vpop.f32.mrf.mxu0
    %v1588 = vadd.f32 0.0, %v1587
    %1589 = vmatmul.f32.gmra.mxu0 %v1514
    %v1590 = vpop.f32.mrf.mxu0
    %v1591 = vadd.f32 0.0, %v1590
    %1592 = vdwg.mxu0
    %1593 = vmatpush.msra.mxu0 %v191
    %1594 = vmatpush.msra.mxu0 %v190
    %1595 = vmatpush.msra.mxu0 %v189
    %1596 = vmatpush.msra.mxu0 %v188
    %1597 = vmatpush.msra.mxu0 %v187
    %1598 = vmatpush.msra.mxu0 %v186
    %1599 = vmatpush.msra.mxu0 %v185
    %1600 = vmatpush.msra.mxu0 %v184
    %1601 = vmatpush.msra.mxu0 %v183
    %1602 = vmatpush.msra.mxu0 %v182
    %1603 = vmatpush.msra.mxu0 %v181
    %1604 = vmatpush.msra.mxu0 %v180
    %1605 = vmatpush.msra.mxu0 %v179
    %1606 = vmatpush.msra.mxu0 %v178
    %1607 = vmatpush.msra.mxu0 %v177
    %1608 = vmatpush.msra.mxu0 %v176
    %1609 = vmatmul.f32.gmra.mxu0 %v1477
    %v1610 = vpop.f32.mrf.mxu0
    %v1611 = vadd.f32 %v1534, %v1610
    %1612 = vmatmul.f32.gmra.mxu0 %v1479
    %v1613 = vpop.f32.mrf.mxu0
    %v1614 = vadd.f32 %v1537, %v1613
    %1615 = vmatmul.f32.gmra.mxu0 %v1481
    %v1616 = vpop.f32.mrf.mxu0
    %v1617 = vadd.f32 %v1540, %v1616
    %1618 = vmatmul.f32.gmra.mxu0 %v1483
    %v1619 = vpop.f32.mrf.mxu0
    %v1620 = vadd.f32 %v1543, %v1619
    %1621 = vmatmul.f32.gmra.mxu0 %v1485
    %v1622 = vpop.f32.mrf.mxu0
    %v1623 = vadd.f32 %v1546, %v1622
    %1624 = vmatmul.f32.gmra.mxu0 %v1487
    %v1625 = vpop.f32.mrf.mxu0
    %v1626 = vadd.f32 %v1549, %v1625
    %1627 = vmatmul.f32.gmra.mxu0 %v1489
    %v1628 = vpop.f32.mrf.mxu0
    %v1629 = vadd.f32 %v1552, %v1628
    %1630 = vmatmul.f32.gmra.mxu0 %v1491
    %v1631 = vpop.f32.mrf.mxu0
    %v1632 = vadd.f32 %v1555, %v1631
    %1633 = vmatmul.f32.gmra.mxu0 %v1493
    %v1634 = vpop.f32.mrf.mxu0
    %v1635 = vadd.f32 %v1558, %v1634
    %1636 = vmatmul.f32.gmra.mxu0 %v1495
    %v1637 = vpop.f32.mrf.mxu0
    %v1638 = vadd.f32 %v1561, %v1637
    %1639 = vmatmul.f32.gmra.mxu0 %v1497
    %v1640 = vpop.f32.mrf.mxu0
    %v1641 = vadd.f32 %v1564, %v1640
    %1642 = vmatmul.f32.gmra.mxu0 %v1499
    %v1643 = vpop.f32.mrf.mxu0
    %v1644 = vadd.f32 %v1567, %v1643
    %1645 = vmatmul.f32.gmra.mxu0 %v1501
    %v1646 = vpop.f32.mrf.mxu0
    %v1647 = vadd.f32 %v1570, %v1646
    %1648 = vmatmul.f32.gmra.mxu0 %v1503
    %v1649 = vpop.f32.mrf.mxu0
    %v1650 = vadd.f32 %v1573, %v1649
    %1651 = vmatmul.f32.gmra.mxu0 %v1505
    %v1652 = vpop.f32.mrf.mxu0
    %v1653 = vadd.f32 %v1576, %v1652
    %1654 = vmatmul.f32.gmra.mxu0 %v1507
    %v1655 = vpop.f32.mrf.mxu0
    %v1656 = vadd.f32 %v1579, %v1655
    %1657 = vmatmul.f32.gmra.mxu0 %v1509
    %v1658 = vpop.f32.mrf.mxu0
    %v1659 = vadd.f32 %v1582, %v1658
    %1660 = vmatmul.f32.gmra.mxu0 %v1511
    %v1661 = vpop.f32.mrf.mxu0
    %v1662 = vadd.f32 %v1585, %v1661
    %1663 = vmatmul.f32.gmra.mxu0 %v1513
    %v1664 = vpop.f32.mrf.mxu0
    %v1665 = vadd.f32 %v1588, %v1664
    %1666 = vmatmul.f32.gmra.mxu0 %v1515
    %v1667 = vpop.f32.mrf.mxu0
    %v1668 = vadd.f32 %v1591, %v1667
    %1669 = vdwg.mxu0
    %v1670 = vadd.f32 %v1611, %v1623
    %v1671 = vadd.f32 %v1614, %v1626
    %v1672 = vadd.f32 %v1617, %v1629
    %v1673 = vadd.f32 %v1620, %v1632
    %v1674 = vadd.f32 %v1670, %v1635
    %v1675 = vadd.f32 %v1671, %v1638
    %v1676 = vadd.f32 %v1672, %v1641
    %v1677 = vadd.f32 %v1673, %v1644
    %v1678 = vadd.f32 %v1674, %v1647
    %v1679 = vadd.f32 %v1675, %v1650
    %v1680 = vadd.f32 %v1676, %v1653
    %v1681 = vadd.f32 %v1677, %v1656
    %v1682 = vadd.f32 %v1678, %v1659
    %v1683 = vadd.f32 %v1679, %v1662
    %v1684 = vadd.f32 %v1680, %v1665
    %v1685 = vadd.f32 %v1681, %v1668
    %v1686 = vmul.f32 %v1682, 0.2
    %v1687 = vmul.f32 %v1683, 0.2
    %v1688 = vmul.f32 %v1684, 0.2
    %v1689 = vmul.f32 %v1685, 0.2
    %v1690 = vld [vmem:[#allocation9] sm:$0xff]
    %v1691 = vld [vmem:[%s8] sm:$0xff]
    %1693 = vset.pattern.permute.xlu0 0
    %1694 = vperm.xlu0 %1693, %v1691
    %v1695 = vpop.permute.xlu0 %1694
    %vm1697 = vcmask 261120
    %v1699 = vsel %vm1697, %v1690, 0
    %1701 = vmatpush.msra.mxu0 0.0
    %1702 = vmatpush.msra.mxu0 0.0
    %1703 = vmatpush.msra.mxu0 0.0
    %1704 = vmatpush.msra.mxu0 0.0
    %1705 = vmatpush.msra.mxu0 0.0
    %1706 = vmatpush.msra.mxu0 0.0
    %1707 = vmatpush.msra.mxu0 0.0
    %1708 = vmatpush.msra.mxu0 0.0
    %1709 = vmatpush.msra.mxu0 0.0
    %1710 = vmatpush.msra.mxu0 0.0
    %1711 = vmatpush.msra.mxu0 0.0
    %1712 = vmatpush.msra.mxu0 0.0
    %1713 = vmatpush.msra.mxu0 %v1689
    %1714 = vmatpush.msra.mxu0 %v1688
    %1715 = vmatpush.msra.mxu0 %v1687
    %1716 = vmatpush.msra.mxu0 %v1686
    %1717 = vmatmul.f32.gmra.mxu0 %v1699
    %v1718 = vpop.f32.mrf.mxu0
    %v1719 = vadd.f32 %v1695, %v1718
    %1720 = vdwg.mxu0
    %v1721 = vtanh.pop %v1719
    %v1722 = vld [vmem:[#allocation11] sm:$0xf]
    %v1723 = vld [vmem:[%s10] sm:$0xf]
    %1725 = vset.pattern.permute.xlu0 0
    %1726 = vperm.xlu0 %1725, %v1723
    %v1727 = vpop.permute.xlu0 %1726
    %vm1729 = vcmask 64512
    %v1731 = vsel %vm1729, %v1722, 0
    %1733 = vmatpush.msra.mxu0 0.0
    %1734 = vmatpush.msra.mxu0 0.0
    %1735 = vmatpush.msra.mxu0 0.0
    %1736 = vmatpush.msra.mxu0 0.0
    %1737 = vmatpush.msra.mxu0 0.0
    %1738 = vmatpush.msra.mxu0 0.0
    %1739 = vmatpush.msra.mxu0 0.0
    %1740 = vmatpush.msra.mxu0 0.0
    %1741 = vmatpush.msra.mxu0 0.0
    %1742 = vmatpush.msra.mxu0 0.0
    %1743 = vmatpush.msra.mxu0 0.0
    %1744 = vmatpush.msra.mxu0 0.0
    %1745 = vmatpush.msra.mxu0 0.0
    %1746 = vmatpush.msra.mxu0 0.0
    %1747 = vmatpush.msra.mxu0 0.0
    %1748 = vmatpush.msra.mxu0 %v1721
    %1749 = vmatmul.f32.gmra.mxu0 %v1731
    %v1750 = vpop.f32.mrf.mxu0
    %v1751 = vadd.f32 %v1727, %v1750
    %1752 = vdwg.mxu0
    %vm1753 = vcmask 11264
    %v1754 = vsel %vm1753, %v1751, -inf
    %v1755 = vrot.slane %v1754, 4
    %v1756 = vmax.f32 %v1754, %v1755
    %v1757 = vrot.slane %v1756, 2
    %v1758 = vmax.f32 %v1756, %v1757
    %v1759 = vrot.slane %v1758, 1
    %v1760 = vmax.f32 %v1758, %v1759
    %v1761 = vsub.f32 %v1751, %v1760
    %v1762 = vmul.f32 %v1761, 1.442695
    %v1763 = vpow.pop %v1762
    %v1764 = vsel %vm1753, %v1763, 0.0
    %v1765 = vrot.slane %v1764, 4
    %v1766 = vadd.f32 %v1764, %v1765
    %v1767 = vrot.slane %v1766, 2
    %v1768 = vadd.f32 %v1766, %v1767
    %v1769 = vrot.slane %v1768, 1
    %v1770 = vadd.f32 %v1768, %v1769
    %v1771 = vrcp.pop %v1770
    %v1772 = vmul.f32 %v1770, %v1771
    %v1773 = vsub.f32 1.0, %v1772
    %v1774 = vmul.f32 %v1771, %v1773
    %v1775 = vadd.f32 %v1771, %v1774
    %vm1776 = vweird.f32 %v1770
    %vm1777 = vweird.f32 %v1771
    %vm1778 = vmor %vm1776, %vm1777
    %v1779 = vsel %vm1778, %v1771, %v1775
    %v1780 = vand.u32 2147483647, %v1770
    %vm1781 = vcmp.eq.f32.partialorder %v1780, 8.507059e+37
    %v1782 = vand.u32 %v1770, 2147483648
    %v1783 = vor.u32 1.1754944e-38, %v1782
    %v1784 = vsel %vm1781, %v1783, %v1779
    %v1785 = vmul.f32 %v1763, %v1784
    %1786 = vst.msk [vmem:[%s11] sm:$0xf] %vm1753, %v1785
    // Predicated region
    $region73: #{model_forward.1} parent=1 // pred_check
      _
    $region74: #{model_forward.1} parent=1 // pred_check_branch
      %1788 = sbr.rel (0) target = $region76
    $region75: #{model_forward.1} parent=1 // pred_region
      _
    $region76: #{model_forward.1} parent=1 // pred_fallthru
      _
    // Predicated region
    $region77: #{model_forward.1} parent=1 // pred_check
      _
    $region78: #{model_forward.1} parent=1 // pred_check_branch
      %1790 = sbr.rel (0) target = $region80
    $region79: #{model_forward.1} parent=1 // pred_region
      _
    $region80: #{model_forward.1} parent=1 // pred_fallthru
      _
    %1791 = vsyncpa [#allocation5], 1
    %1792 = vsyncpa [#allocation7], 1
    %1793 = vsyncpa [#allocation10], 1

</llo_original>
